<compile_context>
chip_gen: v7x
topology: tpu7x:2x2x1
jax: 0.10.0
libtpu: 0.0.40
codegen_flags: <defaults>
</compile_context>

<pallas_src>
import functools

import jax
import jax.numpy as jnp
from jax import lax
from jax.experimental import pallas as pl
from jax.experimental.pallas import tpu as pltpu


def _self_attn_kernel(xq_ref, xk_ref, m_ref, v_ref, o_ref,
                      mmax_ref, lsum_ref, acc_ref, mq_ref, *, C, p_dtype):
    """One (batch, query-tile, key-tile) grid step.

    xq_ref : (C_pad, Tq)    augmented x, query columns (mxu dtype)
    xk_ref : (C_pad, Tk)    augmented x, key columns   (mxu dtype)
    m_ref  : (C_pad, C_pad) folded Wq_aug^T @ Wk_aug   (mxu dtype)
    v_ref  : (C, Tk)        precomputed gamma * Wv_aug @ x_aug key columns
    o_ref  : (C, Tq)        output tile (resident across the key axis), f32
    scratch: running max (1,Tq) f32, running sum (1,Tq) f32,
             accumulator (C,Tq) f32, hoisted mq (C_pad,Tq) mxu dtype
    """
    ki = pl.program_id(2)

    @pl.when(ki == 0)
    def _init():
        mmax_ref[...] = jnp.full(mmax_ref.shape, -jnp.inf, jnp.float32)
        lsum_ref[...] = jnp.zeros(lsum_ref.shape, jnp.float32)
        acc_ref[...] = jnp.zeros(acc_ref.shape, jnp.float32)
        # Hoisted out of the key loop (perf review): mq depends only on (b, qi).
        # mq[b, i] = sum_a M[a, b] * xq[a, i]                   -> (C_pad, Tq)
        mq = lax.dot_general(m_ref[...], xq_ref[...], (((0,), (0,)), ((), ())),
                             preferred_element_type=jnp.float32)
        mq_ref[...] = mq.astype(mq_ref.dtype)

    xk = xk_ref[...]                                            # (C_pad, Tk)

    # s[j, i] = sum_b xk[b, j] * mq[b, i] = energy[i, j]        -> (Tk, Tq)
    s = lax.dot_general(xk, mq_ref[...], (((0,), (0,)), ((), ())),
                        preferred_element_type=jnp.float32)

    # Online softmax over keys (axis 0 of s); queries live on the lane axis,
    # so the running stats broadcast onto the (C, Tq) accumulator for free.
    m_prev = mmax_ref[...]                                      # (1, Tq)
    m_new = jnp.maximum(m_prev, jnp.max(s, axis=0, keepdims=True))
    alpha = jnp.exp(m_prev - m_new)                             # (1, Tq) f32
    # p in p_dtype (bf16 on v6e/v7x per review, f32 otherwise); stats stay f32.
    p = jnp.exp((s - m_new).astype(p_dtype))                    # (Tk, Tq)
    lsum_ref[...] = alpha * lsum_ref[...] + jnp.sum(
        p.astype(jnp.float32), axis=0, keepdims=True)
    # pv[c, i] = sum_j V[c, j] * p[j, i]                        -> (C, Tq)
    pv = jnp.dot(v_ref[...], p.astype(v_ref.dtype),
                 preferred_element_type=jnp.float32)
    acc_ref[...] = alpha * acc_ref[...] + pv
    mmax_ref[...] = m_new

    @pl.when(ki == pl.num_programs(2) - 1)
    def _finalize():
        # Exact normalization (runs once per (b, qi); the approximate EUP
        # reciprocal cost nothing here but ate into the error budget).
        x_res = xq_ref[0:C, :].astype(jnp.float32)              # residual (C, Tq)
        # gamma is already folded into V, so acc/l == gamma * (V attn^T).
        o_ref[...] = (acc_ref[...] / lsum_ref[...] + x_res).astype(o_ref.dtype)


def _pick_tile(n, target):
    """Largest tile <= target that divides n and is a multiple of 128, else n."""
    t = min(target, n)
    while t >= 128:
        if n % t == 0:
            return t
        t -= 128
    return n


def self_attention(x_nchw, params, *, block_q=512, block_k=512,
                   mxu_dtype=jnp.float32, exp_dtype=None):
    """x_nchw: (B, C, H, W) float32, C >= 8. Returns (B, C, H, W) float32.

    block_q/block_k: 512 by default (key-side HBM traffic ~ N^2/tq; 128-wide
      tiles only reach ~30% of the HBM roofline). On v7x (64 MiB VMEM) keep
      tiles <= 512 unless mxu_dtype is bf16.
    mxu_dtype: dtype of the MXU operands (x_aug, folded M, precomputed V).
      jnp.bfloat16 is recommended on v5e/v6e/v7x for real workloads; softmax
      stats, accumulator, normalization and output stay f32 either way.
    exp_dtype: dtype for the exp (p). Leave None (f32) on v5e; jnp.bfloat16
      doubles EUP throughput on v6e/v7x when the kernel is EUP-bound.
    """
    B, C, H, W = x_nchw.shape
    N = H * W
    wq, bq, wk, bk, wv, bv, gamma = params
    hp = lax.Precision.HIGHEST  # host-side folding stays accurate f32

    # Augmented channel dim: +1 ones-row to absorb biases, zero-padded to a
    # multiple of 8 for sublane tiling.
    C_aug = C + 1
    C_pad = ((C_aug + 7) // 8) * 8

    x = x_nchw.reshape(B, C, N).astype(jnp.float32)
    x_aug_f32 = jnp.concatenate(
        [x,
         jnp.ones((B, 1, N), jnp.float32),
         jnp.zeros((B, C_pad - C_aug, N), jnp.float32)], axis=1)          # (B, C_pad, N)

    def _augment(w, b):
        wa = jnp.concatenate([w.astype(jnp.float32), b.astype(jnp.float32)[:, None]], axis=1)
        return jnp.pad(wa, ((0, 0), (0, C_pad - C_aug)))                  # (out, C_pad)

    wq_aug = _augment(wq, bq)                                             # (C//8, C_pad)
    wk_aug = _augment(wk, bk)                                             # (C//8, C_pad)
    # energy = x_aug^T (Wq_aug^T Wk_aug) x_aug: MXU contracts over C_pad, not C//8.
    m_fold = jnp.dot(wq_aug.T, wk_aug, precision=hp)                      # (C_pad, C_pad)
    # Fold gamma into the value weights and precompute V outside the kernel
    # (perf review: V depends only on the key tile; keep it out of the q loop).
    wv_g = gamma.reshape(()).astype(jnp.float32) * _augment(wv, bv)       # (C, C_pad)
    v_full = jnp.einsum('ca,ban->bcn', wv_g, x_aug_f32, precision=hp)     # (B, C, N)

    # Cast MXU operands (halves the dominant key-side HBM stream in bf16).
    x_aug = x_aug_f32.astype(mxu_dtype)
    m_in = m_fold.astype(mxu_dtype)
    v_in = v_full.astype(mxu_dtype)
    p_dtype = jnp.float32 if exp_dtype is None else exp_dtype

    tq = _pick_tile(N, block_q)
    tk = _pick_tile(N, block_k)
    grid = (B, N // tq, N // tk)
    nq_tiles = N // tq

    isz = jnp.dtype(mxu_dtype).itemsize
    cost = pl.CostEstimate(
        # hoisted mq (C_pad^2*N per batch) + energy + attn*V matmuls
        flops=int(2.0 * B * (C_pad * C_pad * N + (C_pad + C) * N * N)),
        transcendentals=int(B * N * N),
        bytes_accessed=int(
            isz * B * (C_pad * N                  # xq: once per batch
                       + C_pad * N * nq_tiles     # xk re-fetched per q tile
                       + C * N * nq_tiles)        # V  re-fetched per q tile
            + isz * C_pad * C_pad                 # folded M (resident)
            + 4 * B * C * N),                     # f32 output writeback
    )

    # TODO(synk): if profiling shows exposed DMA in the small-C (mem-bound)
    # regime, add pipeline_mode=pl.Buffered(3) to the xk / V BlockSpecs.
    kernel = functools.partial(_self_attn_kernel, C=C, p_dtype=p_dtype)
    out = pl.pallas_call(
        kernel,
        out_shape=jax.ShapeDtypeStruct((B, C, N), jnp.float32),
        grid=grid,
        in_specs=[
            pl.BlockSpec((pl.Squeezed(), C_pad, tq), lambda b, qi, ki: (b, 0, qi)),  # x_aug (queries)
            pl.BlockSpec((pl.Squeezed(), C_pad, tk), lambda b, qi, ki: (b, 0, ki)),  # x_aug (keys)
            pl.BlockSpec((C_pad, C_pad), lambda b, qi, ki: (0, 0)),                  # folded M
            pl.BlockSpec((pl.Squeezed(), C, tk), lambda b, qi, ki: (b, 0, ki)),      # precomputed V
        ],
        out_specs=pl.BlockSpec((pl.Squeezed(), C, tq), lambda b, qi, ki: (b, 0, qi)),
        scratch_shapes=[
            pltpu.VMEM((1, tq), jnp.float32),       # running max
            pltpu.VMEM((1, tq), jnp.float32),       # running sum
            pltpu.VMEM((C, tq), jnp.float32),       # output accumulator
            pltpu.VMEM((C_pad, tq), mxu_dtype),     # hoisted mq = M^T @ xq
        ],
        compiler_params=pltpu.CompilerParams(
            dimension_semantics=("parallel", "parallel", "arbitrary"),
            # 48 MiB is fine on 128 MiB parts (v5e/v6e); on v7x (64 MiB) keep
            # tiles <= 512 (or use bf16 operands) so this budget still holds.
            vmem_limit_bytes=48 * 1024 * 1024),
        cost_estimate=cost,
    )(x_aug, x_aug, m_in, v_in)

    return out.reshape(B, C, H, W)


def self_attention_ref(x_nchw, params):
    """Pure-JAX reference mirroring the PyTorch forward (highest-precision f32)."""
    B, C, H, W = x_nchw.shape
    N = H * W
    wq, bq, wk, bk, wv, bv, gamma = params
    hp = lax.Precision.HIGHEST
    x = x_nchw.reshape(B, C, N)
    q = jnp.einsum('oc,bcn->bon', wq, x, precision=hp) + bq[None, :, None]   # (B, C//8, N)
    k = jnp.einsum('oc,bcn->bon', wk, x, precision=hp) + bk[None, :, None]   # (B, C//8, N)
    v = jnp.einsum('oc,bcn->bon', wv, x, precision=hp) + bv[None, :, None]   # (B, C,    N)
    energy = jnp.einsum('bci,bcj->bij', q, k, precision=hp)                  # (B, N, N)
    attn = jax.nn.softmax(energy, axis=2)
    out = jnp.einsum('bcj,bij->bci', v, attn, precision=hp)                  # (B, C, N)
    out = gamma[0] * out + x
    return out.reshape(B, C, H, W)


def init_params(key, C):
    """Deterministic parameter init (shapes from SelfAttention.__init__)."""
    C8 = C // 8
    ks = jax.random.split(key, 6)
    scale = 1.0 / jnp.sqrt(C)
    wq = jax.random.normal(ks[0], (C8, C), jnp.float32) * scale
    bq = jax.random.normal(ks[1], (C8,), jnp.float32) * 0.01
    wk = jax.random.normal(ks[2], (C8, C), jnp.float32) * scale
    bk = jax.random.normal(ks[3], (C8,), jnp.float32) * 0.01
    wv = jax.random.normal(ks[4], (C, C), jnp.float32) * scale
    bv = jax.random.normal(ks[5], (C,), jnp.float32) * 0.01
    # PyTorch inits gamma to 0; use a nonzero deterministic value so the
    # attention path actually contributes to the output under test.
    gamma = jnp.array([0.5], jnp.float32)
    return (wq, bq, wk, bk, wv, bv, gamma)


if __name__ == "__main__":
    B, C, H, W = 2, 16, 16, 16   # C must be >= 8 so that C // 8 >= 1
    key = jax.random.PRNGKey(0)
    kx, kp = jax.random.split(key)
    x = jax.random.normal(kx, (B, C, H, W), jnp.float32)
    params = init_params(kp, C)

    y_ref = jax.block_until_ready(self_attention_ref(x, params))

    # f32 MXU path. Tolerance covers TPU default-precision matmul passes
    # (bf16-operand class) that XLA/Mosaic may use for f32 dots; the compiled
    # kernel typically lands well under 1e-2 of the highest-precision reference.
    y = jax.block_until_ready(self_attention(x, params, mxu_dtype=jnp.float32))
    assert y.shape == (B, C, H, W)
    err32 = float(jnp.max(jnp.abs(y - y_ref)))
    assert jnp.allclose(y, y_ref, atol=2e-2, rtol=2e-2), (
        f"f32 path mismatch vs reference (max abs err {err32})")

    # bf16 MXU-operand path (perf review recommendation for v5e/v6e/v7x);
    # softmax stats / accumulator / normalization stay f32, tolerance is the
    # expected bf16 operand-truncation level.
    y16 = jax.block_until_ready(self_attention(x, params, mxu_dtype=jnp.bfloat16))
    err16 = float(jnp.max(jnp.abs(y16 - y_ref)))
    assert jnp.allclose(y16, y_ref, atol=1e-1, rtol=1e-1), (
        f"bf16 path mismatch vs reference (max abs err {err16})")

    print("KERNEL_OK")
</pallas_src>

<mosaic_0001>
module attributes {stable_mosaic.version = 11 : i64} {
  func.func @_self_attn_kernel(%arg0: i32, %arg1: i32, %arg2: i32, %arg3: memref<1x24x256xf32, #tpu.memory_space<vmem>>, %arg4: memref<1x24x256xf32, #tpu.memory_space<vmem>>, %arg5: memref<24x24xf32, #tpu.memory_space<vmem>>, %arg6: memref<1x16x256xf32, #tpu.memory_space<vmem>>, %arg7: memref<1x16x256xf32, #tpu.memory_space<vmem>>, %arg8: memref<1x256xf32, #tpu.memory_space<vmem>>, %arg9: memref<1x256xf32, #tpu.memory_space<vmem>>, %arg10: memref<16x256xf32, #tpu.memory_space<vmem>>, %arg11: memref<24x256xf32, #tpu.memory_space<vmem>>) attributes {dimension_semantics = [#tpu.dimension_semantics<parallel>, #tpu.dimension_semantics<parallel>, #tpu.dimension_semantics<arbitrary>], iteration_bounds = array<i64: 2, 1, 1>, scalar_prefetch = 0 : i64, scratch_operands = 4 : i64, tpu.core_type = #tpu.core_type<tc>, window_params = [{transform_indices = @transform_0, window_bounds = array<i64: 1, 24, 256>}, {transform_indices = @transform_1, window_bounds = array<i64: 1, 24, 256>}, {pipeline_mode = #tpu.pipeline_mode<synchronous>, transform_indices = @transform_2, window_bounds = array<i64: 24, 24>}, {transform_indices = @transform_3, window_bounds = array<i64: 1, 16, 256>}, {transform_indices = @transform_4, window_bounds = array<i64: 1, 16, 256>}]} {
    %c0_i32 = arith.constant 0 : i32
    %0 = arith.cmpi eq, %arg2, %c0_i32 : i32
    %1 = arith.extui %0 : i1 to i32
    %c0_i32_0 = arith.constant 0 : i32
    %2 = arith.cmpi ne, %1, %c0_i32_0 : i32
    scf.if %2 {
      %cst_25 = arith.constant 0xFF800000 : f32
      %34 = vector.broadcast %cst_25 : f32 to vector<1x256xf32>
      %c0_26 = arith.constant 0 : index
      %c0_27 = arith.constant 0 : index
      %35 = vector.load %arg8[%c0_26, %c0_27] : memref<1x256xf32, #tpu.memory_space<vmem>>, vector<1x256xf32>
      tpu.vector_store %arg8[%c0_26, %c0_27], %34 {strides = array<i32>} : memref<1x256xf32, #tpu.memory_space<vmem>>, vector<1x256xf32>,
      %cst_28 = arith.constant 0.000000e+00 : f32
      %36 = vector.broadcast %cst_28 : f32 to vector<1x256xf32>
      %c0_29 = arith.constant 0 : index
      %c0_30 = arith.constant 0 : index
      %37 = vector.load %arg9[%c0_29, %c0_30] : memref<1x256xf32, #tpu.memory_space<vmem>>, vector<1x256xf32>
      tpu.vector_store %arg9[%c0_29, %c0_30], %36 {strides = array<i32>} : memref<1x256xf32, #tpu.memory_space<vmem>>, vector<1x256xf32>,
      %cst_31 = arith.constant 0.000000e+00 : f32
      %38 = vector.broadcast %cst_31 : f32 to vector<16x256xf32>
      %c0_32 = arith.constant 0 : index
      %c0_33 = arith.constant 0 : index
      %39 = vector.load %arg10[%c0_32, %c0_33] : memref<16x256xf32, #tpu.memory_space<vmem>>, vector<16x256xf32>
      tpu.vector_store %arg10[%c0_32, %c0_33], %38 {strides = array<i32>} : memref<16x256xf32, #tpu.memory_space<vmem>>, vector<16x256xf32>,
      %c0_34 = arith.constant 0 : index
      %c0_35 = arith.constant 0 : index
      %40 = vector.load %arg5[%c0_34, %c0_35] : memref<24x24xf32, #tpu.memory_space<vmem>>, vector<24x24xf32>
      %c0_36 = arith.constant 0 : index
      %c0_37 = arith.constant 0 : index
      %c0_38 = arith.constant 0 : index
      %41 = vector.load %arg3[%c0_36, %c0_37, %c0_38] : memref<1x24x256xf32, #tpu.memory_space<vmem>>, vector<1x24x256xf32>
      %42 = vector.shape_cast %41 : vector<1x24x256xf32> to vector<24x256xf32>
      %cst_39 = arith.constant dense<0.000000e+00> : vector<24x256xf32>
      %43 = tpu.matmul %40, %42, %cst_39 {dimension_numbers = #tpu.dot_dimension_numbers<[0], [0], [1], [1], [0, 1, 1, 1], [], []>} : vector<24x24xf32>, vector<24x256xf32>, vector<24x256xf32> -> vector<24x256xf32>
      %c0_40 = arith.constant 0 : index
      %c0_41 = arith.constant 0 : index
      %44 = vector.load %arg11[%c0_40, %c0_41] : memref<24x256xf32, #tpu.memory_space<vmem>>, vector<24x256xf32>
      tpu.vector_store %arg11[%c0_40, %c0_41], %43 {strides = array<i32>} : memref<24x256xf32, #tpu.memory_space<vmem>>, vector<24x256xf32>,
    } else {
    }
    %c0 = arith.constant 0 : index
    %c0_1 = arith.constant 0 : index
    %c0_2 = arith.constant 0 : index
    %3 = vector.load %arg4[%c0, %c0_1, %c0_2] : memref<1x24x256xf32, #tpu.memory_space<vmem>>, vector<1x24x256xf32>
    %4 = vector.shape_cast %3 : vector<1x24x256xf32> to vector<24x256xf32>
    %c0_3 = arith.constant 0 : index
    %c0_4 = arith.constant 0 : index
    %5 = vector.load %arg11[%c0_3, %c0_4] : memref<24x256xf32, #tpu.memory_space<vmem>>, vector<24x256xf32>
    %cst = arith.constant dense<0.000000e+00> : vector<256x256xf32>
    %6 = tpu.matmul %4, %5, %cst {dimension_numbers = #tpu.dot_dimension_numbers<[0], [0], [1], [1], [0, 1, 1, 1], [], []>} : vector<24x256xf32>, vector<24x256xf32>, vector<256x256xf32> -> vector<256x256xf32>
    %c0_5 = arith.constant 0 : index
    %c0_6 = arith.constant 0 : index
    %7 = vector.load %arg8[%c0_5, %c0_6] : memref<1x256xf32, #tpu.memory_space<vmem>>, vector<1x256xf32>
    %cst_7 = arith.constant dense<0xFF800000> : vector<256xf32>
    %8 = vector.multi_reduction <maximumf>, %6, %cst_7 [0] : vector<256x256xf32> to vector<256xf32>
    %9 = vector.shape_cast %8 : vector<256xf32> to vector<1x256xf32>
    %10 = arith.maximumf %7, %9 : vector<1x256xf32>
    %11 = arith.subf %7, %10 : vector<1x256xf32>
    %12 = math.exp %11 : vector<1x256xf32>
    %13 = vector.broadcast %10 : vector<1x256xf32> to vector<256x256xf32>
    %14 = arith.subf %6, %13 : vector<256x256xf32>
    %15 = math.exp %14 : vector<256x256xf32>
    %c0_8 = arith.constant 0 : index
    %c0_9 = arith.constant 0 : index
    %16 = vector.load %arg9[%c0_8, %c0_9] : memref<1x256xf32, #tpu.memory_space<vmem>>, vector<1x256xf32>
    %17 = arith.mulf %12, %16 : vector<1x256xf32>
    %cst_10 = arith.constant dense<0.000000e+00> : vector<256xf32>
    %18 = vector.multi_reduction <add>, %15, %cst_10 [0] : vector<256x256xf32> to vector<256xf32>
    %19 = vector.shape_cast %18 : vector<256xf32> to vector<1x256xf32>
    %20 = arith.addf %17, %19 : vector<1x256xf32>
    %c0_11 = arith.constant 0 : index
    %c0_12 = arith.constant 0 : index
    %21 = vector.load %arg9[%c0_11, %c0_12] : memref<1x256xf32, #tpu.memory_space<vmem>>, vector<1x256xf32>
    tpu.vector_store %arg9[%c0_11, %c0_12], %20 {strides = array<i32>} : memref<1x256xf32, #tpu.memory_space<vmem>>, vector<1x256xf32>,
    %c0_13 = arith.constant 0 : index
    %c0_14 = arith.constant 0 : index
    %c0_15 = arith.constant 0 : index
    %22 = vector.load %arg6[%c0_13, %c0_14, %c0_15] : memref<1x16x256xf32, #tpu.memory_space<vmem>>, vector<1x16x256xf32>
    %23 = vector.shape_cast %22 : vector<1x16x256xf32> to vector<16x256xf32>
    %cst_16 = arith.constant dense<0.000000e+00> : vector<16x256xf32>
    %24 = tpu.matmul %23, %15, %cst_16 {dimension_numbers = #tpu.dot_dimension_numbers<[1], [0], [0], [1], [0, 0, 1, 1], [], []>} : vector<16x256xf32>, vector<256x256xf32>, vector<16x256xf32> -> vector<16x256xf32>
    %c0_17 = arith.constant 0 : index
    %c0_18 = arith.constant 0 : index
    %25 = vector.load %arg10[%c0_17, %c0_18] : memref<16x256xf32, #tpu.memory_space<vmem>>, vector<16x256xf32>
    %26 = vector.broadcast %12 : vector<1x256xf32> to vector<16x256xf32>
    %27 = arith.mulf %26, %25 : vector<16x256xf32>
    %28 = arith.addf %27, %24 : vector<16x256xf32>
    %c0_19 = arith.constant 0 : index
    %c0_20 = arith.constant 0 : index
    %29 = vector.load %arg10[%c0_19, %c0_20] : memref<16x256xf32, #tpu.memory_space<vmem>>, vector<16x256xf32>
    tpu.vector_store %arg10[%c0_19, %c0_20], %28 {strides = array<i32>} : memref<16x256xf32, #tpu.memory_space<vmem>>, vector<16x256xf32>,
    %c0_21 = arith.constant 0 : index
    %c0_22 = arith.constant 0 : index
    %30 = vector.load %arg8[%c0_21, %c0_22] : memref<1x256xf32, #tpu.memory_space<vmem>>, vector<1x256xf32>
    tpu.vector_store %arg8[%c0_21, %c0_22], %10 {strides = array<i32>} : memref<1x256xf32, #tpu.memory_space<vmem>>, vector<1x256xf32>,
    %c0_i32_23 = arith.constant 0 : i32
    %31 = arith.cmpi eq, %arg2, %c0_i32_23 : i32
    %32 = arith.extui %31 : i1 to i32
    %c0_i32_24 = arith.constant 0 : i32
    %33 = arith.cmpi ne, %32, %c0_i32_24 : i32
    scf.if %33 {
      %c0_25 = arith.constant 0 : index
      %c0_26 = arith.constant 0 : index
      %c0_27 = arith.constant 0 : index
      %34 = vector.load %arg3[%c0_25, %c0_26, %c0_27] : memref<1x24x256xf32, #tpu.memory_space<vmem>>, vector<1x16x256xf32>
      %35 = vector.shape_cast %34 : vector<1x16x256xf32> to vector<16x256xf32>
      %c0_28 = arith.constant 0 : index
      %c0_29 = arith.constant 0 : index
      %36 = vector.load %arg10[%c0_28, %c0_29] : memref<16x256xf32, #tpu.memory_space<vmem>>, vector<16x256xf32>
      %c0_30 = arith.constant 0 : index
      %c0_31 = arith.constant 0 : index
      %37 = vector.load %arg9[%c0_30, %c0_31] : memref<1x256xf32, #tpu.memory_space<vmem>>, vector<1x256xf32>
      %38 = vector.broadcast %37 : vector<1x256xf32> to vector<16x256xf32>
      %39 = arith.divf %36, %38 : vector<16x256xf32>
      %40 = arith.addf %39, %35 : vector<16x256xf32>
      %c0_32 = arith.constant 0 : index
      %c0_33 = arith.constant 0 : index
      %c0_34 = arith.constant 0 : index
      %41 = vector.load %arg7[%c0_32, %c0_33, %c0_34] : memref<1x16x256xf32, #tpu.memory_space<vmem>>, vector<1x16x256xf32>
      %42 = vector.shape_cast %41 : vector<1x16x256xf32> to vector<16x256xf32>
      %43 = vector.shape_cast %40 : vector<16x256xf32> to vector<1x16x256xf32>
      tpu.vector_store %arg7[%c0_32, %c0_33, %c0_34], %43 {strides = array<i32>} : memref<1x16x256xf32, #tpu.memory_space<vmem>>, vector<1x16x256xf32>,
    } else {
    }
    return
  }
  func.func @transform_0(%arg0: i32, %arg1: i32, %arg2: i32) -> (i32, i32, i32) {
    %c0_i32 = arith.constant 0 : i32
    %c0_i32_0 = arith.constant 0 : i32
    return %arg0, %c0_i32, %arg1 : i32, i32, i32
  }
  func.func @transform_1(%arg0: i32, %arg1: i32, %arg2: i32) -> (i32, i32, i32) {
    %c0_i32 = arith.constant 0 : i32
    %c0_i32_0 = arith.constant 0 : i32
    return %arg0, %c0_i32, %arg2 : i32, i32, i32
  }
  func.func @transform_2(%arg0: i32, %arg1: i32, %arg2: i32) -> (i32, i32) {
    %c0_i32 = arith.constant 0 : i32
    %c0_i32_0 = arith.constant 0 : i32
    %c0_i32_1 = arith.constant 0 : i32
    return %c0_i32, %c0_i32_0 : i32, i32
  }
  func.func @transform_3(%arg0: i32, %arg1: i32, %arg2: i32) -> (i32, i32, i32) {
    %c0_i32 = arith.constant 0 : i32
    %c0_i32_0 = arith.constant 0 : i32
    return %arg0, %c0_i32, %arg2 : i32, i32, i32
  }
  func.func @transform_4(%arg0: i32, %arg1: i32, %arg2: i32) -> (i32, i32, i32) {
    %c0_i32 = arith.constant 0 : i32
    %c0_i32_0 = arith.constant 0 : i32
    return %arg0, %c0_i32, %arg1 : i32, i32, i32
  }
}

</mosaic_0001>

<llo_original>
// kernel: tpu_custom_call.1
$region0: #{tpu_custom_call.1}
  #allocation0 [shape = 'u32[]', space=smem, size = 0x4, offset = 0x4, fixed_abs, tag = 'smem constant byte address 0x4 - core index']
  #allocation1 [shape = 'u32[144,128]{1,0:T(1,128)}', space=vmem, size = 0x12000, scoped, tag = 'internal scratch']
  #allocation2 [shape = 'f32[1,256]{1,0:T(1,128)}', space=vmem, size = 0x400, scoped, tag = 'scratch operand']
  #allocation3 [shape = 'f32[1,256]{1,0:T(1,128)}', space=vmem, size = 0x400, scoped, tag = 'scratch operand']
  #allocation4 [shape = 'f32[16,256]{1,0:T(8,128)}', space=vmem, size = 0x4000, scoped, tag = 'scratch operand']
  #allocation5 [shape = 'f32[24,256]{1,0:T(8,128)}', space=vmem, size = 0x6000, scoped, tag = 'scratch operand']
  %s0 = inlined_call_operand.hbm [shape: f32[2,24,256], index: 0, kind: input, shape index: {}]
  %s1 = inlined_call_operand.hbm [shape: f32[2,24,256], index: 1, kind: input, shape index: {}]
  %s2 = inlined_call_operand.hbm [shape: f32[24,24], index: 2, kind: input, shape index: {}]
  %s3 = inlined_call_operand.hbm [shape: f32[2,16,256], index: 3, kind: input, shape index: {}]
  %s4 = inlined_call_operand.hbm [shape: f32[2,16,256], index: 4, kind: output, shape index: {}]
  %s5 = sld [smem:[#allocation0]]
  $region73: #{tpu_custom_call.1} parent=0
    _
  %s7 = ssub.s32 1, %s5
  %s8 = scalar_select 0, %s7, %s5
  $region1: #{tpu_custom_call.1} parent=0
    #allocation6 [shape = 'u8[49152]{0}', space=vmem, size = 0xc000, scoped, tag = 'input window, operand 0']
    #allocation7 [shape = 's32[2]{0}', space=sflag, size = 0x8, scoped, tag = 'scoped memory for tpu_custom_call.1']
    #allocation8 [shape = 's32[2]{0}', space=sflag, size = 0x8, scoped, tag = 'scoped memory for tpu_custom_call.1']
    #allocation9 [shape = 'u8[49152]{0}', space=vmem, size = 0xc000, scoped, tag = 'input window, operand 1']
    #allocation10 [shape = 's32[2]{0}', space=sflag, size = 0x8, scoped, tag = 'scoped memory for tpu_custom_call.1']
    #allocation11 [shape = 'u8[12288]{0}', space=vmem, size = 0x3000, scoped, tag = 'input window, operand 2, single buffered']
    #allocation12 [shape = 'u8[32768]{0}', space=vmem, size = 0x8000, scoped, tag = 'input window, operand 3']
    #allocation13 [shape = 's32[2]{0}', space=sflag, size = 0x8, scoped, tag = 'scoped memory for tpu_custom_call.1']
    #allocation14 [shape = 'u8[32768]{0}', space=vmem, size = 0x8000, scoped, tag = 'output window, operand 0']
    %9 = vsyncpa [#allocation7], 0
    %s10 = scalar_lea.sflag [#allocation7], 1
    %11 = vsyncpa %s10, 0
    %12 = vsyncpa [#allocation10], 0
    %s13 = scalar_lea.sflag [#allocation10], 1
    %14 = vsyncpa %s13, 0
    %15 = vsyncpa [#allocation13], 0
    %s16 = scalar_lea.sflag [#allocation13], 1
    %17 = vsyncpa %s16, 0
    %18 = vsyncpa [#allocation8], 0
    %s19 = scalar_lea.sflag [#allocation8], 1
    %20 = vsyncpa %s19, 0
    loop: start=0, step=1, limit=4
    $region2: #{tpu_custom_call.1} parent=1 // loop_pre_header
      _
    $region3: #{tpu_custom_call.1} parent=1 // loop_header
      %s22 = sphi 0, %s26
      %p23 = scmp.ge.s32.totalorder %s22, 4
      %s29 = sphi 0, %s48
      %s30 = sphi 0, %s44
      %s31 = sphi 0, %s40
      %s32 = sphi 0, %s29
      %s33 = sphi 0, %s30
      %s34 = sphi 0, %s31
      %s35 = sphi 0, %s32
      %s36 = sphi 0, %s33
      %s37 = sphi 0, %s34
      %s53 = sphi 0, %s55
      %s56 = sphi 0, %s53
      %s57 = sphi 0, %s56
      %s73 = sphi 0, %s57
      %s81 = sphi 0, %s83
      %s84 = sphi 0, %s81
      %s85 = sphi 0, %s84
      %s101 = sphi 0, %s85
      %s105 = sphi 0, %s105
      %s107 = sphi 0, %s105
      %s108 = sphi 0, %s107
      %s122 = sphi 0, %s108
      %s130 = sphi 0, %s132
      %s133 = sphi 0, %s130
      %s134 = sphi 0, %s133
      %s150 = sphi 0, %s134
      %s158 = sphi 0, %s160
      %s161 = sphi 0, %s158
      %s162 = sphi 0, %s161
      %s178 = sphi 0, %s162
    $region4: #{tpu_custom_call.1} parent=1 // loop_header_branch
      %25 = sbr.rel (%p23) target = $region8
    $region5: #{tpu_custom_call.1} parent=1 // loop_body
      %s27 = ssub.s32 %s22, 1
      %s28 = ssub.s32 %s22, 2
      %s38 = sadd.s32 1, %s31
      %p39 = scmp.ge.s32.totalorder %s38, 1
      %s40 = scalar_select %p39, 0, %s38
      %s41 = sadd.s32 1, %s30
      %s42 = scalar_select %p39, %s41, %s30
      %p43 = scmp.ge.s32.totalorder %s42, 1
      %s44 = scalar_select %p43, 0, %s42
      %s45 = sadd.s32 1, %s29
      %s46 = scalar_select %p43, %s45, %s29
      %p47 = scmp.ge.s32.totalorder %s46, 2
      %s48 = scalar_select %p47, 0, %s46
      %s49 = ssub.s32 %s29, %s48
      %s50 = ssub.s32 %s30, %s44
      %s51 = sor.u32 %s49, %s50
      %p52 = scmp.eq.s32.totalorder %s51, 0
      %s54 = sadd.s32 %s53, 1
      %s55 = scalar_select %p52, %s53, %s54
      %p58 = pneg %p52
      %p59 = scmp.eq.s32.totalorder %s22, 1
      %p60 = por %p58, %p59
      %p61 = scmp.ne.s32.totalorder %s53, %s56
      %p62 = scmp.eq.s32.totalorder %s22, 0
      %p63 = por %p61, %p62
      %p64 = scmp.ne.s32.totalorder %s53, %s56
      %p65 = scmp.eq.s32.totalorder %s27, 1
      %p66 = por %p64, %p65
      %p67 = scmp.ne.s32.totalorder %s56, %s57
      %p68 = scmp.eq.s32.totalorder %s27, 0
      %p69 = por %p67, %p68
      %p70 = scmp.ne.s32.totalorder %s56, %s57
      %p71 = scmp.eq.s32.totalorder %s28, 1
      %p72 = por %p70, %p71
      %p74 = scmp.ne.s32.totalorder %s57, %s73
      %p75 = scmp.eq.s32.totalorder %s28, 0
      %p76 = por %p74, %p75
      %s77 = ssub.s32 %s29, %s48
      %s78 = ssub.s32 %s31, %s40
      %s79 = sor.u32 %s77, %s78
      %p80 = scmp.eq.s32.totalorder %s79, 0
      %s82 = sadd.s32 %s81, 1
      %s83 = scalar_select %p80, %s81, %s82
      %p86 = pneg %p80
      %p87 = scmp.eq.s32.totalorder %s22, 1
      %p88 = por %p86, %p87
      %p89 = scmp.ne.s32.totalorder %s81, %s84
      %p90 = scmp.eq.s32.totalorder %s22, 0
      %p91 = por %p89, %p90
      %p92 = scmp.ne.s32.totalorder %s81, %s84
      %p93 = scmp.eq.s32.totalorder %s27, 1
      %p94 = por %p92, %p93
      %p95 = scmp.ne.s32.totalorder %s84, %s85
      %p96 = scmp.eq.s32.totalorder %s27, 0
      %p97 = por %p95, %p96
      %p98 = scmp.ne.s32.totalorder %s84, %s85
      %p99 = scmp.eq.s32.totalorder %s28, 1
      %p100 = por %p98, %p99
      %p102 = scmp.ne.s32.totalorder %s85, %s101
      %p103 = scmp.eq.s32.totalorder %s28, 0
      %p104 = por %p102, %p103
      %s106 = sadd.s32 %s105, 1
      %p109 = scmp.eq.s32.totalorder %s22, 1
      %p110 = scmp.ne.s32.totalorder %s105, %s107
      %p111 = scmp.eq.s32.totalorder %s22, 0
      %p112 = por %p110, %p111
      %p113 = scmp.ne.s32.totalorder %s105, %s107
      %p114 = scmp.eq.s32.totalorder %s27, 1
      %p115 = por %p113, %p114
      %p116 = scmp.ne.s32.totalorder %s107, %s108
      %p117 = scmp.eq.s32.totalorder %s27, 0
      %p118 = por %p116, %p117
      %p119 = scmp.ne.s32.totalorder %s107, %s108
      %p120 = scmp.eq.s32.totalorder %s28, 1
      %p121 = por %p119, %p120
      %p123 = scmp.ne.s32.totalorder %s108, %s122
      %p124 = scmp.eq.s32.totalorder %s28, 0
      %p125 = por %p123, %p124
      %s126 = ssub.s32 %s29, %s48
      %s127 = ssub.s32 %s31, %s40
      %s128 = sor.u32 %s126, %s127
      %p129 = scmp.eq.s32.totalorder %s128, 0
      %s131 = sadd.s32 %s130, 1
      %s132 = scalar_select %p129, %s130, %s131
      %p135 = pneg %p129
      %p136 = scmp.eq.s32.totalorder %s22, 1
      %p137 = por %p135, %p136
      %p138 = scmp.ne.s32.totalorder %s130, %s133
      %p139 = scmp.eq.s32.totalorder %s22, 0
      %p140 = por %p138, %p139
      %p141 = scmp.ne.s32.totalorder %s130, %s133
      %p142 = scmp.eq.s32.totalorder %s27, 1
      %p143 = por %p141, %p142
      %p144 = scmp.ne.s32.totalorder %s133, %s134
      %p145 = scmp.eq.s32.totalorder %s27, 0
      %p146 = por %p144, %p145
      %p147 = scmp.ne.s32.totalorder %s133, %s134
      %p148 = scmp.eq.s32.totalorder %s28, 1
      %p149 = por %p147, %p148
      %p151 = scmp.ne.s32.totalorder %s134, %s150
      %p152 = scmp.eq.s32.totalorder %s28, 0
      %p153 = por %p151, %p152
      %s154 = ssub.s32 %s29, %s48
      %s155 = ssub.s32 %s30, %s44
      %s156 = sor.u32 %s154, %s155
      %p157 = scmp.eq.s32.totalorder %s156, 0
      %s159 = sadd.s32 %s158, 1
      %s160 = scalar_select %p157, %s158, %s159
      %p163 = pneg %p157
      %p164 = scmp.eq.s32.totalorder %s22, 1
      %p165 = por %p163, %p164
      %p166 = scmp.ne.s32.totalorder %s158, %s161
      %p167 = scmp.eq.s32.totalorder %s22, 0
      %p168 = por %p166, %p167
      %p169 = scmp.ne.s32.totalorder %s158, %s161
      %p170 = scmp.eq.s32.totalorder %s27, 1
      %p171 = por %p169, %p170
      %p172 = scmp.ne.s32.totalorder %s161, %s162
      %p173 = scmp.eq.s32.totalorder %s27, 0
      %p174 = por %p172, %p173
      %p175 = scmp.ne.s32.totalorder %s161, %s162
      %p176 = scmp.eq.s32.totalorder %s28, 1
      %p177 = por %p175, %p176
      %p179 = scmp.ne.s32.totalorder %s162, %s178
      %p180 = scmp.eq.s32.totalorder %s28, 0
      %p181 = por %p179, %p180
      %p182 = scmp.le.s32.totalorder 1, %s22
      %p183 = scmp.lt.s32.totalorder %s22, 3
      %p184 = pnand %p182, %p183
      %p185 = pneg %p184
      // Predicated region
      $region9: #{tpu_custom_call.1} parent=5 // pred_check
        _
      $region10: #{tpu_custom_call.1} parent=5 // pred_check_branch
        %187 = sbr.rel (%p184) target = $region12
      $region11: #{tpu_custom_call.1} parent=5 // pred_region
        %s188 = ssub.s32 %s22, 1
        // Predicated region
        $region13: #{tpu_custom_call.1} parent=11 // pred_check
          %p189 = pneg %p118
        $region14: #{tpu_custom_call.1} parent=11 // pred_check_branch
          %191 = sbr.rel (%p189) target = $region16
        $region15: #{tpu_custom_call.1} parent=11 // pred_region
          %s193 = ssub.s32 384, 384
          %194 = vsyncadd [#allocation10], %s193
          %s195 = sshll.u32 [#allocation11], 4
          %s196 = int_to_ptr.vmem [resolvable:$true] %s195
          %201 = dma.hbm_to_vmem [thread:$0]  %s2, 384, %s196, [#allocation10], 128, 128, 8
        $region16: #{tpu_custom_call.1} parent=11 // pred_fallthru
          _
      $region12: #{tpu_custom_call.1} parent=5 // pred_fallthru
        _
      %p202 = scmp.lt.s32.totalorder %s22, 2
      // Predicated region
      $region17: #{tpu_custom_call.1} parent=5 // pred_check
        %p203 = pneg %p202
      $region18: #{tpu_custom_call.1} parent=5 // pred_check_branch
        %205 = sbr.rel (%p203) target = $region20
      $region19: #{tpu_custom_call.1} parent=5 // pred_region
        // Predicated region
        $region21: #{tpu_custom_call.1} parent=19 // pred_check
          %p206 = pneg %p63
        $region22: #{tpu_custom_call.1} parent=19 // pred_check_branch
          %208 = sbr.rel (%p206) target = $region24
        $region23: #{tpu_custom_call.1} parent=19 // pred_region
          %s209 = sand.u32 %s53, 1
          %s210 = scalar_lea.sflag [#allocation7], %s209
          %s211 = sand.u32 %s53, 1
          %s212 = smul.addr %s211, 48
          %s213 = scalar_lea.vmem [#allocation6], %s212
          %s214 = smul.u32 2, %s30
          %s216 = ssub.s32 768, 768
          %217 = vsyncadd %s210, %s216
          %s218 = smul.addr %s29, 6
          %s219 = sadd.s32 %s214, %s218
          %s220 = smul.addr %s219, 128
          %s221 = scalar_lea.hbm %s0, %s220
          %s222 = sshll.u32 %s213, 4
          %s223 = int_to_ptr.vmem [resolvable:$true] %s222
          %228 = dma.hbm_to_vmem [thread:$0]  %s221, 768, %s223, %s210, 256, 256, 16
        $region24: #{tpu_custom_call.1} parent=19 // pred_fallthru
          _
        // Predicated region
        $region25: #{tpu_custom_call.1} parent=19 // pred_check
          %p229 = pneg %p91
        $region26: #{tpu_custom_call.1} parent=19 // pred_check_branch
          %231 = sbr.rel (%p229) target = $region28
        $region27: #{tpu_custom_call.1} parent=19 // pred_region
          %s232 = sand.u32 %s22, 1
          %s233 = scalar_lea.sflag [#allocation10], %s232
          %s234 = sand.u32 %s81, 1
          %s235 = smul.addr %s234, 48
          %s236 = scalar_lea.vmem [#allocation9], %s235
          %s237 = smul.u32 2, %s31
          %s239 = ssub.s32 768, 768
          %240 = vsyncadd %s233, %s239
          %s241 = smul.addr %s29, 6
          %s242 = sadd.s32 %s237, %s241
          %s243 = smul.addr %s242, 128
          %s244 = scalar_lea.hbm %s1, %s243
          %s245 = sshll.u32 %s236, 4
          %s246 = int_to_ptr.vmem [resolvable:$true] %s245
          %251 = dma.hbm_to_vmem [thread:$0]  %s244, 768, %s246, %s233, 256, 256, 16
        $region28: #{tpu_custom_call.1} parent=19 // pred_fallthru
          _
        // Predicated region
        $region29: #{tpu_custom_call.1} parent=19 // pred_check
          %p252 = pneg %p140
        $region30: #{tpu_custom_call.1} parent=19 // pred_check_branch
          %254 = sbr.rel (%p252) target = $region32
        $region31: #{tpu_custom_call.1} parent=19 // pred_region
          %s255 = sand.u32 %s130, 1
          %s256 = scalar_lea.sflag [#allocation13], %s255
          %s257 = sand.u32 %s130, 1
          %s258 = smul.addr %s257, 32
          %s259 = scalar_lea.vmem [#allocation12], %s258
          %s260 = smul.u32 2, %s31
          %s262 = ssub.s32 512, 512
          %263 = vsyncadd %s256, %s262
          %s264 = smul.addr %s29, 4
          %s265 = sadd.s32 %s260, %s264
          %s266 = smul.addr %s265, 128
          %s267 = scalar_lea.hbm %s3, %s266
          %s268 = sshll.u32 %s259, 4
          %s269 = int_to_ptr.vmem [resolvable:$true] %s268
          %274 = dma.hbm_to_vmem [thread:$0]  %s267, 512, %s269, %s256, 256, 256, 16
        $region32: #{tpu_custom_call.1} parent=19 // pred_fallthru
          _
      $region20: #{tpu_custom_call.1} parent=5 // pred_fallthru
        _
      %p275 = scmp.le.s32.totalorder 1, %s22
      %p276 = scmp.lt.s32.totalorder %s22, 3
      %p277 = pnand %p275, %p276
      %p278 = pneg %p277
      // Predicated region
      $region33: #{tpu_custom_call.1} parent=5 // pred_check
        _
      $region34: #{tpu_custom_call.1} parent=5 // pred_check_branch
        %280 = sbr.rel (%p277) target = $region36
      $region35: #{tpu_custom_call.1} parent=5 // pred_region
        %s281 = ssub.s32 %s22, 1
        %s282 = sand.u32 %s56, 1
        %s283 = scalar_lea.sflag [#allocation7], %s282
        %s284 = sand.u32 %s56, 1
        %s285 = smul.addr %s284, 48
        %s286 = scalar_lea.vmem [#allocation6], %s285
        // Predicated region
        $region37: #{tpu_custom_call.1} parent=35 // pred_check
          %p287 = pneg %p69
        $region38: #{tpu_custom_call.1} parent=35 // pred_check_branch
          %289 = sbr.rel (%p287) target = $region40
        $region39: #{tpu_custom_call.1} parent=35 // pred_region
          %290 = dma.done %s283, 768
        $region40: #{tpu_custom_call.1} parent=35 // pred_fallthru
          _
        %s291 = sand.u32 %s27, 1
        %s292 = scalar_lea.sflag [#allocation10], %s291
        %s293 = sand.u32 %s84, 1
        %s294 = smul.addr %s293, 48
        %s295 = scalar_lea.vmem [#allocation9], %s294
        // Predicated region
        $region41: #{tpu_custom_call.1} parent=35 // pred_check
          %p296 = pneg %p97
        $region42: #{tpu_custom_call.1} parent=35 // pred_check_branch
          %298 = sbr.rel (%p296) target = $region44
        $region43: #{tpu_custom_call.1} parent=35 // pred_region
          %299 = dma.done %s292, 768
        $region44: #{tpu_custom_call.1} parent=35 // pred_fallthru
          _
        // Predicated region
        $region45: #{tpu_custom_call.1} parent=35 // pred_check
          %p300 = pneg %p118
        $region46: #{tpu_custom_call.1} parent=35 // pred_check_branch
          %302 = sbr.rel (%p300) target = $region48
        $region47: #{tpu_custom_call.1} parent=35 // pred_region
          %303 = dma.done [#allocation10], 384
        $region48: #{tpu_custom_call.1} parent=35 // pred_fallthru
          _
        %s304 = sand.u32 %s133, 1
        %s305 = scalar_lea.sflag [#allocation13], %s304
        %s306 = sand.u32 %s133, 1
        %s307 = smul.addr %s306, 32
        %s308 = scalar_lea.vmem [#allocation12], %s307
        // Predicated region
        $region49: #{tpu_custom_call.1} parent=35 // pred_check
          %p309 = pneg %p146
        $region50: #{tpu_custom_call.1} parent=35 // pred_check_branch
          %311 = sbr.rel (%p309) target = $region52
        $region51: #{tpu_custom_call.1} parent=35 // pred_region
          %312 = dma.done %s305, 512
        $region52: #{tpu_custom_call.1} parent=35 // pred_fallthru
          _
        %s313 = sand.u32 %s56, 1
        %s314 = scalar_lea.sflag [#allocation7], %s313
        %s315 = sand.u32 %s56, 1
        %s316 = smul.addr %s315, 48
        %s317 = scalar_lea.vmem [#allocation6], %s316
        %p318 = pneg %p69
        %p319 = pneg %p66
        %s320 = sand.u32 %s27, 1
        %s321 = scalar_lea.sflag [#allocation10], %s320
        %s322 = sand.u32 %s84, 1
        %s323 = smul.addr %s322, 48
        %s324 = scalar_lea.vmem [#allocation9], %s323
        %p325 = pneg %p97
        %p326 = pneg %p94
        %p327 = pneg %p118
        %p328 = pneg %p115
        %s329 = sand.u32 %s133, 1
        %s330 = scalar_lea.sflag [#allocation13], %s329
        %s331 = sand.u32 %s133, 1
        %s332 = smul.addr %s331, 32
        %s333 = scalar_lea.vmem [#allocation12], %s332
        %p334 = pneg %p146
        %p335 = pneg %p143
        %p336 = pneg %p174
        %p337 = pneg %p171
        %s338 = sand.u32 %s161, 1
        %s339 = scalar_lea.sflag [#allocation8], %s338
        %s340 = sand.u32 %s161, 1
        %s341 = smul.addr %s340, 32
        %s342 = scalar_lea.vmem [#allocation14], %s341
        %s343 = smul.u32 2, %s33
        %s344 = smul.u32 2, %s34
        %s345 = smul.u32 2, %s34
        %s346 = smul.u32 2, %s33
        %p347 = scmp.eq.s32.totalorder %s34, 0
        // Predicated region
        $region53: #{tpu_custom_call.1} parent=35 // pred_check
          %p348 = pneg %p347
        $region54: #{tpu_custom_call.1} parent=35 // pred_check_branch
          %350 = sbr.rel (%p348) target = $region56
        $region55: #{tpu_custom_call.1} parent=35 // pred_region
          %v351 = vlaneseq
          %vm352 = vcmp.ge.s32.totalorder %v351, 0
          %vm353 = vcmp.lt.s32.totalorder %v351, 256
          %vm354 = vmand %vm352, %vm353
          %355 = vst.msk [vmem:[#allocation2] sm:$0x3] %vm354, -inf
          %356 = vst.msk [vmem:[#allocation3] sm:$0x3] %vm354, 0.0
          %357 = vst [vmem:[#allocation4] sm:$0xff] 0.0
          %358 = vst [vmem:[#allocation4 + $0x8] sm:$0xff] 0.0
          %359 = vst [vmem:[#allocation4 + $0x10] sm:$0xff] 0.0
          %360 = vst [vmem:[#allocation4 + $0x18] sm:$0xff] 0.0
          %v361 = vld [vmem:[#allocation11] sm:$0xff]
          %v362 = vld [vmem:[#allocation11 + $0x8] sm:$0xff]
          %v363 = vld [vmem:[#allocation11 + $0x10] sm:$0xff]
          %v364 = vld [vmem:[%s286] sm:$0xff]
          %v365 = vld [vmem:[%s286 + $0x8] sm:$0xff]
          %v366 = vld [vmem:[%s286 + $0x10] sm:$0xff]
          %v367 = vld [vmem:[%s286 + $0x18] sm:$0xff]
          %v368 = vld [vmem:[%s286 + $0x20] sm:$0xff]
          %v369 = vld [vmem:[%s286 + $0x28] sm:$0xff]
          %370 = vxpose.xlu0.b32.start [1/16] %v361, 128
          %371 = vxpose.xlu0.b32.cont [2/16] %v362, 128
          %372 = vxpose.xlu0.b32.cont [3/16] %v363, 128
          %373 = vxpose.xlu0.b32.cont [4/16] 0.0, 128
          %374 = vxpose.xlu0.b32.cont [5/16] 0.0, 128
          %375 = vxpose.xlu0.b32.cont [6/16] 0.0, 128
          %376 = vxpose.xlu0.b32.cont [7/16] 0.0, 128
          %377 = vxpose.xlu0.b32.cont [8/16] 0.0, 128
          %378 = vxpose.xlu0.b32.cont [9/16] 0.0, 128
          %379 = vxpose.xlu0.b32.cont [10/16] 0.0, 128
          %380 = vxpose.xlu0.b32.cont [11/16] 0.0, 128
          %381 = vxpose.xlu0.b32.cont [12/16] 0.0, 128
          %382 = vxpose.xlu0.b32.cont [13/16] 0.0, 128
          %383 = vxpose.xlu0.b32.cont [14/16] 0.0, 128
          %384 = vxpose.xlu0.b32.cont [15/16] 0.0, 128
          %385 = vxpose.xlu0.b32.end [16/16] 0.0, 128
          %v386 = vpop.trf.xlu0
          %v387 = vpop.trf.xlu0
          %v388 = vpop.trf.xlu0
          %v389 = vpop.trf.xlu0
          %v390 = vpop.trf.xlu0
          %v391 = vpop.trf.xlu0
          %v392 = vpop.trf.xlu0
          %v393 = vpop.trf.xlu0
          %v394 = vpop.trf.xlu0
          %v395 = vpop.trf.xlu0
          %v396 = vpop.trf.xlu0
          %v397 = vpop.trf.xlu0
          %v398 = vpop.trf.xlu0
          %v399 = vpop.trf.xlu0
          %v400 = vpop.trf.xlu0
          %v401 = vpop.trf.xlu0
          %vm402 = vcmask 195584
          %v404 = vsel %vm402, %v386, 0
          %v407 = vsel %vm402, %v387, 0
          %v410 = vsel %vm402, %v388, 0
          %412 = vmatprep.subr.mxu0 %v365
          %413 = vmatpush1.msra.mxu0 %v364
          %414 = vmatprep.subr.mxu0 %v367
          %415 = vmatpush1.msra.mxu0 %v366
          %416 = vmatprep.subr.mxu0 %v369
          %417 = vmatpush1.msra.mxu0 %v368
          %418 = vmatprep.subr.mxu0 0.0
          %419 = vmatpush1.msra.mxu0 0.0
          %420 = vmatprep.subr.mxu0 0.0
          %421 = vmatpush1.msra.mxu0 0.0
          %422 = vmatprep.subr.mxu0 0.0
          %423 = vmatpush1.msra.mxu0 0.0
          %424 = vmatprep.subr.mxu0 0.0
          %425 = vmatpush1.msra.mxu0 0.0
          %426 = vmatprep.subr.mxu0 0.0
          %427 = vmatpush1.msra.mxu0 0.0
          %428 = vmatprep.subr.mxu0 0.0
          %429 = vmatpush1.msra.mxu0 0.0
          %430 = vmatprep.subr.mxu0 0.0
          %431 = vmatpush1.msra.mxu0 0.0
          %432 = vmatprep.subr.mxu0 0.0
          %433 = vmatpush1.msra.mxu0 0.0
          %434 = vmatprep.subr.mxu0 0.0
          %435 = vmatpush1.msra.mxu0 0.0
          %436 = vmatprep.subr.mxu0 0.0
          %437 = vmatpush1.msra.mxu0 0.0
          %438 = vmatprep.subr.mxu0 0.0
          %439 = vmatpush1.msra.mxu0 0.0
          %440 = vmatprep.subr.mxu0 0.0
          %441 = vmatpush1.msra.mxu0 0.0
          %442 = vmatprep.subr.mxu0 0.0
          %443 = vmatpush1.msra.mxu0 0.0
          %444 = vmatprep.subr.mxu0 0.0
          %445 = vmatpush1.msra.mxu0 0.0
          %446 = vmatprep.subr.mxu0 0.0
          %447 = vmatpush1.msra.mxu0 0.0
          %448 = vmatprep.subr.mxu0 0.0
          %449 = vmatpush1.msra.mxu0 0.0
          %450 = vmatprep.subr.mxu0 0.0
          %451 = vmatpush1.msra.mxu0 0.0
          %452 = vmatprep.subr.mxu0 0.0
          %453 = vmatpush1.msra.mxu0 0.0
          %454 = vmatprep.subr.mxu0 0.0
          %455 = vmatpush1.msra.mxu0 0.0
          %456 = vmatprep.subr.mxu0 0.0
          %457 = vmatpush1.msra.mxu0 0.0
          %458 = vmatprep.subr.mxu0 0.0
          %459 = vmatpush1.msra.mxu0 0.0
          %460 = vmatprep.subr.mxu0 0.0
          %461 = vmatpush1.msra.mxu0 0.0
          %462 = vmatprep.subr.mxu0 0.0
          %463 = vmatpush1.msra.mxu0 0.0
          %464 = vmatprep.subr.mxu0 0.0
          %465 = vmatpush1.msra.mxu0 0.0
          %466 = vmatprep.subr.mxu0 0.0
          %467 = vmatpush1.msra.mxu0 0.0
          %468 = vmatprep.subr.mxu0 0.0
          %469 = vmatpush1.msra.mxu0 0.0
          %470 = vmatprep.subr.mxu0 0.0
          %471 = vmatpush1.msra.mxu0 0.0
          %472 = vmatprep.subr.mxu0 0.0
          %473 = vmatpush1.msra.mxu0 0.0
          %474 = vmatprep.subr.mxu0 0.0
          %475 = vmatpush1.msra.mxu0 0.0
          %476 = vmatprep.mubr.f32.mxu0 0.0
          %477 = vmatmul.mubr.f32.gmra.mrb[0].mxu0 %v404
          %v478 = vpop.f32.mrb[0].mxu0
          %v479 = vadd.f32 0.0, %v478
          %v480 = vpop.f32.mrb[0].mxu0
          %v481 = vadd.f32 0.0, %v480
          %482 = vmatprep.mubr.f32.mxu0 0.0
          %483 = vmatmul.mubr.f32.gmra.mrb[0].mxu0 %v407
          %v484 = vpop.f32.mrb[0].mxu0
          %v485 = vadd.f32 0.0, %v484
          %v486 = vpop.f32.mrb[0].mxu0
          %v487 = vadd.f32 0.0, %v486
          %488 = vmatprep.mubr.f32.mxu0 0.0
          %489 = vmatmul.mubr.f32.gmra.mrb[0].mxu0 %v410
          %v490 = vpop.f32.mrb[0].mxu0
          %v491 = vadd.f32 0.0, %v490
          %v492 = vpop.f32.mrb[0].mxu0
          %v493 = vadd.f32 0.0, %v492
          %494 = vdwg.mxu0
          %495 = vst [vmem:[#allocation5] sm:$0xff] %v479
          %496 = vst [vmem:[#allocation5 + $0x8] sm:$0xff] %v481
          %497 = vst [vmem:[#allocation5 + $0x10] sm:$0xff] %v485
          %498 = vst [vmem:[#allocation5 + $0x18] sm:$0xff] %v487
          %499 = vst [vmem:[#allocation5 + $0x20] sm:$0xff] %v491
          %500 = vst [vmem:[#allocation5 + $0x28] sm:$0xff] %v493
        $region56: #{tpu_custom_call.1} parent=35 // pred_fallthru
          _
        %v501 = vld [vmem:[%s295] sm:$0xff]
        %v502 = vld [vmem:[%s295 + $0x8] sm:$0xff]
        %v503 = vld [vmem:[%s295 + $0x10] sm:$0xff]
        %v504 = vld [vmem:[%s295 + $0x18] sm:$0xff]
        %v505 = vld [vmem:[%s295 + $0x20] sm:$0xff]
        %v506 = vld [vmem:[%s295 + $0x28] sm:$0xff]
        %v507 = vld [vmem:[#allocation5] sm:$0xff]
        %v508 = vld [vmem:[#allocation5 + $0x8] sm:$0xff]
        %v509 = vld [vmem:[#allocation5 + $0x10] sm:$0xff]
        %v510 = vld [vmem:[#allocation5 + $0x18] sm:$0xff]
        %v511 = vld [vmem:[#allocation5 + $0x20] sm:$0xff]
        %v512 = vld [vmem:[#allocation5 + $0x28] sm:$0xff]
        %513 = vxpose.xlu0.b32.start [1/16] %v501, 128
        %514 = vxpose.xlu0.b32.cont [2/16] %v503, 128
        %515 = vxpose.xlu0.b32.cont [3/16] %v505, 128
        %516 = vxpose.xlu0.b32.cont [4/16] 0.0, 128
        %517 = vxpose.xlu0.b32.cont [5/16] 0.0, 128
        %518 = vxpose.xlu0.b32.cont [6/16] 0.0, 128
        %519 = vxpose.xlu0.b32.cont [7/16] 0.0, 128
        %520 = vxpose.xlu0.b32.cont [8/16] 0.0, 128
        %521 = vxpose.xlu0.b32.cont [9/16] 0.0, 128
        %522 = vxpose.xlu0.b32.cont [10/16] 0.0, 128
        %523 = vxpose.xlu0.b32.cont [11/16] 0.0, 128
        %524 = vxpose.xlu0.b32.cont [12/16] 0.0, 128
        %525 = vxpose.xlu0.b32.cont [13/16] 0.0, 128
        %526 = vxpose.xlu0.b32.cont [14/16] 0.0, 128
        %527 = vxpose.xlu0.b32.cont [15/16] 0.0, 128
        %528 = vxpose.xlu0.b32.end [16/16] 0.0, 128
        %v529 = vpop.trf.xlu0
        %v530 = vpop.trf.xlu0
        %v531 = vpop.trf.xlu0
        %v532 = vpop.trf.xlu0
        %v533 = vpop.trf.xlu0
        %v534 = vpop.trf.xlu0
        %v535 = vpop.trf.xlu0
        %v536 = vpop.trf.xlu0
        %v537 = vpop.trf.xlu0
        %v538 = vpop.trf.xlu0
        %v539 = vpop.trf.xlu0
        %v540 = vpop.trf.xlu0
        %v541 = vpop.trf.xlu0
        %v542 = vpop.trf.xlu0
        %v543 = vpop.trf.xlu0
        %v544 = vpop.trf.xlu0
        %545 = vxpose.xlu0.b32.start [1/16] %v502, 128
        %546 = vxpose.xlu0.b32.cont [2/16] %v504, 128
        %547 = vxpose.xlu0.b32.cont [3/16] %v506, 128
        %548 = vxpose.xlu0.b32.cont [4/16] 0.0, 128
        %549 = vxpose.xlu0.b32.cont [5/16] 0.0, 128
        %550 = vxpose.xlu0.b32.cont [6/16] 0.0, 128
        %551 = vxpose.xlu0.b32.cont [7/16] 0.0, 128
        %552 = vxpose.xlu0.b32.cont [8/16] 0.0, 128
        %553 = vxpose.xlu0.b32.cont [9/16] 0.0, 128
        %554 = vxpose.xlu0.b32.cont [10/16] 0.0, 128
        %555 = vxpose.xlu0.b32.cont [11/16] 0.0, 128
        %556 = vxpose.xlu0.b32.cont [12/16] 0.0, 128
        %557 = vxpose.xlu0.b32.cont [13/16] 0.0, 128
        %558 = vxpose.xlu0.b32.cont [14/16] 0.0, 128
        %559 = vxpose.xlu0.b32.cont [15/16] 0.0, 128
        %560 = vxpose.xlu0.b32.end [16/16] 0.0, 128
        %v561 = vpop.trf.xlu0
        %v562 = vpop.trf.xlu0
        %v563 = vpop.trf.xlu0
        %v564 = vpop.trf.xlu0
        %v565 = vpop.trf.xlu0
        %v566 = vpop.trf.xlu0
        %v567 = vpop.trf.xlu0
        %v568 = vpop.trf.xlu0
        %v569 = vpop.trf.xlu0
        %v570 = vpop.trf.xlu0
        %v571 = vpop.trf.xlu0
        %v572 = vpop.trf.xlu0
        %v573 = vpop.trf.xlu0
        %v574 = vpop.trf.xlu0
        %v575 = vpop.trf.xlu0
        %v576 = vpop.trf.xlu0
        %vm577 = vcmask 195584
        %v579 = vsel %vm577, %v529, 0
        %v582 = vsel %vm577, %v530, 0
        %v585 = vsel %vm577, %v531, 0
        %v588 = vsel %vm577, %v532, 0
        %v591 = vsel %vm577, %v533, 0
        %v594 = vsel %vm577, %v534, 0
        %v597 = vsel %vm577, %v535, 0
        %v600 = vsel %vm577, %v536, 0
        %v603 = vsel %vm577, %v537, 0
        %v606 = vsel %vm577, %v538, 0
        %v609 = vsel %vm577, %v539, 0
        %v612 = vsel %vm577, %v540, 0
        %v615 = vsel %vm577, %v541, 0
        %v618 = vsel %vm577, %v542, 0
        %v621 = vsel %vm577, %v543, 0
        %v624 = vsel %vm577, %v544, 0
        %v627 = vsel %vm577, %v561, 0
        %v630 = vsel %vm577, %v562, 0
        %v633 = vsel %vm577, %v563, 0
        %v636 = vsel %vm577, %v564, 0
        %v639 = vsel %vm577, %v565, 0
        %v642 = vsel %vm577, %v566, 0
        %v645 = vsel %vm577, %v567, 0
        %v648 = vsel %vm577, %v568, 0
        %v651 = vsel %vm577, %v569, 0
        %v654 = vsel %vm577, %v570, 0
        %v657 = vsel %vm577, %v571, 0
        %v660 = vsel %vm577, %v572, 0
        %v663 = vsel %vm577, %v573, 0
        %v666 = vsel %vm577, %v574, 0
        %v669 = vsel %vm577, %v575, 0
        %v672 = vsel %vm577, %v576, 0
        %674 = vmatprep.subr.mxu0 %v508
        %675 = vmatpush1.msra.mxu0 %v507
        %676 = vmatprep.subr.mxu0 %v510
        %677 = vmatpush1.msra.mxu0 %v509
        %678 = vmatprep.subr.mxu0 %v512
        %679 = vmatpush1.msra.mxu0 %v511
        %680 = vmatprep.subr.mxu0 0.0
        %681 = vmatpush1.msra.mxu0 0.0
        %682 = vmatprep.subr.mxu0 0.0
        %683 = vmatpush1.msra.mxu0 0.0
        %684 = vmatprep.subr.mxu0 0.0
        %685 = vmatpush1.msra.mxu0 0.0
        %686 = vmatprep.subr.mxu0 0.0
        %687 = vmatpush1.msra.mxu0 0.0
        %688 = vmatprep.subr.mxu0 0.0
        %689 = vmatpush1.msra.mxu0 0.0
        %690 = vmatprep.subr.mxu0 0.0
        %691 = vmatpush1.msra.mxu0 0.0
        %692 = vmatprep.subr.mxu0 0.0
        %693 = vmatpush1.msra.mxu0 0.0
        %694 = vmatprep.subr.mxu0 0.0
        %695 = vmatpush1.msra.mxu0 0.0
        %696 = vmatprep.subr.mxu0 0.0
        %697 = vmatpush1.msra.mxu0 0.0
        %698 = vmatprep.subr.mxu0 0.0
        %699 = vmatpush1.msra.mxu0 0.0
        %700 = vmatprep.subr.mxu0 0.0
        %701 = vmatpush1.msra.mxu0 0.0
        %702 = vmatprep.subr.mxu0 0.0
        %703 = vmatpush1.msra.mxu0 0.0
        %704 = vmatprep.subr.mxu0 0.0
        %705 = vmatpush1.msra.mxu0 0.0
        %706 = vmatprep.subr.mxu0 0.0
        %707 = vmatpush1.msra.mxu0 0.0
        %708 = vmatprep.subr.mxu0 0.0
        %709 = vmatpush1.msra.mxu0 0.0
        %710 = vmatprep.subr.mxu0 0.0
        %711 = vmatpush1.msra.mxu0 0.0
        %712 = vmatprep.subr.mxu0 0.0
        %713 = vmatpush1.msra.mxu0 0.0
        %714 = vmatprep.subr.mxu0 0.0
        %715 = vmatpush1.msra.mxu0 0.0
        %716 = vmatprep.subr.mxu0 0.0
        %717 = vmatpush1.msra.mxu0 0.0
        %718 = vmatprep.subr.mxu0 0.0
        %719 = vmatpush1.msra.mxu0 0.0
        %720 = vmatprep.subr.mxu0 0.0
        %721 = vmatpush1.msra.mxu0 0.0
        %722 = vmatprep.subr.mxu0 0.0
        %723 = vmatpush1.msra.mxu0 0.0
        %724 = vmatprep.subr.mxu0 0.0
        %725 = vmatpush1.msra.mxu0 0.0
        %726 = vmatprep.subr.mxu0 0.0
        %727 = vmatpush1.msra.mxu0 0.0
        %728 = vmatprep.subr.mxu0 0.0
        %729 = vmatpush1.msra.mxu0 0.0
        %730 = vmatprep.subr.mxu0 0.0
        %731 = vmatpush1.msra.mxu0 0.0
        %732 = vmatprep.subr.mxu0 0.0
        %733 = vmatpush1.msra.mxu0 0.0
        %734 = vmatprep.subr.mxu0 0.0
        %735 = vmatpush1.msra.mxu0 0.0
        %736 = vmatprep.subr.mxu0 0.0
        %737 = vmatpush1.msra.mxu0 0.0
        %738 = vmatprep.mubr.f32.mxu0 0.0
        %739 = vmatmul.mubr.f32.gmra.mrb[0].mxu0 %v579
        %v740 = vpop.f32.mrb[0].mxu0
        %v741 = vadd.f32 0.0, %v740
        %v742 = vpop.f32.mrb[0].mxu0
        %v743 = vadd.f32 0.0, %v742
        %744 = vmatprep.mubr.f32.mxu0 0.0
        %745 = vmatmul.mubr.f32.gmra.mrb[0].mxu0 %v582
        %v746 = vpop.f32.mrb[0].mxu0
        %v747 = vadd.f32 0.0, %v746
        %v748 = vpop.f32.mrb[0].mxu0
        %v749 = vadd.f32 0.0, %v748
        %750 = vmatprep.mubr.f32.mxu0 0.0
        %751 = vmatmul.mubr.f32.gmra.mrb[0].mxu0 %v585
        %v752 = vpop.f32.mrb[0].mxu0
        %v753 = vadd.f32 0.0, %v752
        %v754 = vpop.f32.mrb[0].mxu0
        %v755 = vadd.f32 0.0, %v754
        %756 = vmatprep.mubr.f32.mxu0 0.0
        %757 = vmatmul.mubr.f32.gmra.mrb[0].mxu0 %v588
        %v758 = vpop.f32.mrb[0].mxu0
        %v759 = vadd.f32 0.0, %v758
        %v760 = vpop.f32.mrb[0].mxu0
        %v761 = vadd.f32 0.0, %v760
        %762 = vmatprep.mubr.f32.mxu0 0.0
        %763 = vmatmul.mubr.f32.gmra.mrb[0].mxu0 %v591
        %v764 = vpop.f32.mrb[0].mxu0
        %v765 = vadd.f32 0.0, %v764
        %v766 = vpop.f32.mrb[0].mxu0
        %v767 = vadd.f32 0.0, %v766
        %768 = vmatprep.mubr.f32.mxu0 0.0
        %769 = vmatmul.mubr.f32.gmra.mrb[0].mxu0 %v594
        %v770 = vpop.f32.mrb[0].mxu0
        %v771 = vadd.f32 0.0, %v770
        %v772 = vpop.f32.mrb[0].mxu0
        %v773 = vadd.f32 0.0, %v772
        %774 = vmatprep.mubr.f32.mxu0 0.0
        %775 = vmatmul.mubr.f32.gmra.mrb[0].mxu0 %v597
        %v776 = vpop.f32.mrb[0].mxu0
        %v777 = vadd.f32 0.0, %v776
        %v778 = vpop.f32.mrb[0].mxu0
        %v779 = vadd.f32 0.0, %v778
        %780 = vmatprep.mubr.f32.mxu0 0.0
        %781 = vmatmul.mubr.f32.gmra.mrb[0].mxu0 %v600
        %v782 = vpop.f32.mrb[0].mxu0
        %v783 = vadd.f32 0.0, %v782
        %v784 = vpop.f32.mrb[0].mxu0
        %v785 = vadd.f32 0.0, %v784
        %786 = vmatprep.mubr.f32.mxu0 0.0
        %787 = vmatmul.mubr.f32.gmra.mrb[0].mxu0 %v603
        %v788 = vpop.f32.mrb[0].mxu0
        %v789 = vadd.f32 0.0, %v788
        %v790 = vpop.f32.mrb[0].mxu0
        %v791 = vadd.f32 0.0, %v790
        %792 = vmatprep.mubr.f32.mxu0 0.0
        %793 = vmatmul.mubr.f32.gmra.mrb[0].mxu0 %v606
        %v794 = vpop.f32.mrb[0].mxu0
        %v795 = vadd.f32 0.0, %v794
        %v796 = vpop.f32.mrb[0].mxu0
        %v797 = vadd.f32 0.0, %v796
        %798 = vmatprep.mubr.f32.mxu0 0.0
        %799 = vmatmul.mubr.f32.gmra.mrb[0].mxu0 %v609
        %v800 = vpop.f32.mrb[0].mxu0
        %v801 = vadd.f32 0.0, %v800
        %v802 = vpop.f32.mrb[0].mxu0
        %v803 = vadd.f32 0.0, %v802
        %804 = vmatprep.mubr.f32.mxu0 0.0
        %805 = vmatmul.mubr.f32.gmra.mrb[0].mxu0 %v612
        %v806 = vpop.f32.mrb[0].mxu0
        %v807 = vadd.f32 0.0, %v806
        %v808 = vpop.f32.mrb[0].mxu0
        %v809 = vadd.f32 0.0, %v808
        %810 = vmatprep.mubr.f32.mxu0 0.0
        %811 = vmatmul.mubr.f32.gmra.mrb[0].mxu0 %v615
        %v812 = vpop.f32.mrb[0].mxu0
        %v813 = vadd.f32 0.0, %v812
        %v814 = vpop.f32.mrb[0].mxu0
        %v815 = vadd.f32 0.0, %v814
        %816 = vmatprep.mubr.f32.mxu0 0.0
        %817 = vmatmul.mubr.f32.gmra.mrb[0].mxu0 %v618
        %v818 = vpop.f32.mrb[0].mxu0
        %v819 = vadd.f32 0.0, %v818
        %v820 = vpop.f32.mrb[0].mxu0
        %v821 = vadd.f32 0.0, %v820
        %822 = vmatprep.mubr.f32.mxu0 0.0
        %823 = vmatmul.mubr.f32.gmra.mrb[0].mxu0 %v621
        %v824 = vpop.f32.mrb[0].mxu0
        %v825 = vadd.f32 0.0, %v824
        %v826 = vpop.f32.mrb[0].mxu0
        %v827 = vadd.f32 0.0, %v826
        %828 = vmatprep.mubr.f32.mxu0 0.0
        %829 = vmatmul.mubr.f32.gmra.mrb[0].mxu0 %v624
        %v830 = vpop.f32.mrb[0].mxu0
        %v831 = vadd.f32 0.0, %v830
        %v832 = vpop.f32.mrb[0].mxu0
        %v833 = vadd.f32 0.0, %v832
        %834 = vmatprep.mubr.f32.mxu0 0.0
        %835 = vmatmul.mubr.f32.gmra.mrb[0].mxu0 %v627
        %v836 = vpop.f32.mrb[0].mxu0
        %v837 = vadd.f32 0.0, %v836
        %v838 = vpop.f32.mrb[0].mxu0
        %v839 = vadd.f32 0.0, %v838
        %840 = vmatprep.mubr.f32.mxu0 0.0
        %841 = vmatmul.mubr.f32.gmra.mrb[0].mxu0 %v630
        %v842 = vpop.f32.mrb[0].mxu0
        %v843 = vadd.f32 0.0, %v842
        %v844 = vpop.f32.mrb[0].mxu0
        %v845 = vadd.f32 0.0, %v844
        %846 = vmatprep.mubr.f32.mxu0 0.0
        %847 = vmatmul.mubr.f32.gmra.mrb[0].mxu0 %v633
        %v848 = vpop.f32.mrb[0].mxu0
        %v849 = vadd.f32 0.0, %v848
        %v850 = vpop.f32.mrb[0].mxu0
        %v851 = vadd.f32 0.0, %v850
        %852 = vmatprep.mubr.f32.mxu0 0.0
        %853 = vmatmul.mubr.f32.gmra.mrb[0].mxu0 %v636
        %v854 = vpop.f32.mrb[0].mxu0
        %v855 = vadd.f32 0.0, %v854
        %v856 = vpop.f32.mrb[0].mxu0
        %v857 = vadd.f32 0.0, %v856
        %858 = vmatprep.mubr.f32.mxu0 0.0
        %859 = vmatmul.mubr.f32.gmra.mrb[0].mxu0 %v639
        %v860 = vpop.f32.mrb[0].mxu0
        %v861 = vadd.f32 0.0, %v860
        %v862 = vpop.f32.mrb[0].mxu0
        %v863 = vadd.f32 0.0, %v862
        %864 = vmatprep.mubr.f32.mxu0 0.0
        %865 = vmatmul.mubr.f32.gmra.mrb[0].mxu0 %v642
        %v866 = vpop.f32.mrb[0].mxu0
        %v867 = vadd.f32 0.0, %v866
        %v868 = vpop.f32.mrb[0].mxu0
        %v869 = vadd.f32 0.0, %v868
        %870 = vmatprep.mubr.f32.mxu0 0.0
        %871 = vmatmul.mubr.f32.gmra.mrb[0].mxu0 %v645
        %v872 = vpop.f32.mrb[0].mxu0
        %v873 = vadd.f32 0.0, %v872
        %v874 = vpop.f32.mrb[0].mxu0
        %v875 = vadd.f32 0.0, %v874
        %876 = vmatprep.mubr.f32.mxu0 0.0
        %877 = vmatmul.mubr.f32.gmra.mrb[0].mxu0 %v648
        %v878 = vpop.f32.mrb[0].mxu0
        %v879 = vadd.f32 0.0, %v878
        %v880 = vpop.f32.mrb[0].mxu0
        %v881 = vadd.f32 0.0, %v880
        %882 = vmatprep.mubr.f32.mxu0 0.0
        %883 = vmatmul.mubr.f32.gmra.mrb[0].mxu0 %v651
        %v884 = vpop.f32.mrb[0].mxu0
        %v885 = vadd.f32 0.0, %v884
        %v886 = vpop.f32.mrb[0].mxu0
        %v887 = vadd.f32 0.0, %v886
        %888 = vmatprep.mubr.f32.mxu0 0.0
        %889 = vmatmul.mubr.f32.gmra.mrb[0].mxu0 %v654
        %v890 = vpop.f32.mrb[0].mxu0
        %v891 = vadd.f32 0.0, %v890
        %v892 = vpop.f32.mrb[0].mxu0
        %v893 = vadd.f32 0.0, %v892
        %894 = vmatprep.mubr.f32.mxu0 0.0
        %895 = vmatmul.mubr.f32.gmra.mrb[0].mxu0 %v657
        %v896 = vpop.f32.mrb[0].mxu0
        %v897 = vadd.f32 0.0, %v896
        %v898 = vpop.f32.mrb[0].mxu0
        %v899 = vadd.f32 0.0, %v898
        %900 = vmatprep.mubr.f32.mxu0 0.0
        %901 = vmatmul.mubr.f32.gmra.mrb[0].mxu0 %v660
        %v902 = vpop.f32.mrb[0].mxu0
        %v903 = vadd.f32 0.0, %v902
        %v904 = vpop.f32.mrb[0].mxu0
        %v905 = vadd.f32 0.0, %v904
        %906 = vmatprep.mubr.f32.mxu0 0.0
        %907 = vmatmul.mubr.f32.gmra.mrb[0].mxu0 %v663
        %v908 = vpop.f32.mrb[0].mxu0
        %v909 = vadd.f32 0.0, %v908
        %v910 = vpop.f32.mrb[0].mxu0
        %v911 = vadd.f32 0.0, %v910
        %912 = vmatprep.mubr.f32.mxu0 0.0
        %913 = vmatmul.mubr.f32.gmra.mrb[0].mxu0 %v666
        %v914 = vpop.f32.mrb[0].mxu0
        %v915 = vadd.f32 0.0, %v914
        %v916 = vpop.f32.mrb[0].mxu0
        %v917 = vadd.f32 0.0, %v916
        %918 = vmatprep.mubr.f32.mxu0 0.0
        %919 = vmatmul.mubr.f32.gmra.mrb[0].mxu0 %v669
        %v920 = vpop.f32.mrb[0].mxu0
        %v921 = vadd.f32 0.0, %v920
        %v922 = vpop.f32.mrb[0].mxu0
        %v923 = vadd.f32 0.0, %v922
        %924 = vmatprep.mubr.f32.mxu0 0.0
        %925 = vmatmul.mubr.f32.gmra.mrb[0].mxu0 %v672
        %v926 = vpop.f32.mrb[0].mxu0
        %v927 = vadd.f32 0.0, %v926
        %v928 = vpop.f32.mrb[0].mxu0
        %v929 = vadd.f32 0.0, %v928
        %930 = vdwg.mxu0
        %v931 = vld [vmem:[#allocation2] sm:$0x3]
        %v932 = vmax.f32 %v741, %v753
        %v933 = vmax.f32 %v747, %v759
        %v934 = vmax.f32 %v932, %v765
        %v935 = vmax.f32 %v933, %v771
        %v936 = vmax.f32 %v934, %v777
        %v937 = vmax.f32 %v935, %v783
        %v938 = vmax.f32 %v936, %v789
        %v939 = vmax.f32 %v937, %v795
        %v940 = vmax.f32 %v938, %v801
        %v941 = vmax.f32 %v939, %v807
        %v942 = vmax.f32 %v940, %v813
        %v943 = vmax.f32 %v941, %v819
        %v944 = vmax.f32 %v942, %v825
        %v945 = vmax.f32 %v943, %v831
        %v946 = vmax.f32 %v944, %v837
        %v947 = vmax.f32 %v945, %v843
        %v948 = vmax.f32 %v946, %v849
        %v949 = vmax.f32 %v947, %v855
        %v950 = vmax.f32 %v948, %v861
        %v951 = vmax.f32 %v949, %v867
        %v952 = vmax.f32 %v950, %v873
        %v953 = vmax.f32 %v951, %v879
        %v954 = vmax.f32 %v952, %v885
        %v955 = vmax.f32 %v953, %v891
        %v956 = vmax.f32 %v954, %v897
        %v957 = vmax.f32 %v955, %v903
        %v958 = vmax.f32 %v956, %v909
        %v959 = vmax.f32 %v957, %v915
        %v960 = vmax.f32 %v958, %v921
        %v961 = vmax.f32 %v959, %v927
        %v962 = vmax.f32 %v960, %v961
        %v963 = vrot.slane %v962, 4
        %v964 = vmax.f32 %v962, %v963
        %v965 = vrot.slane %v964, 2
        %v966 = vmax.f32 %v964, %v965
        %v967 = vrot.slane %v966, 1
        %v968 = vmax.f32 %v966, %v967
        %v969 = vmax.f32 %v743, %v755
        %v970 = vmax.f32 %v749, %v761
        %v971 = vmax.f32 %v969, %v767
        %v972 = vmax.f32 %v970, %v773
        %v973 = vmax.f32 %v971, %v779
        %v974 = vmax.f32 %v972, %v785
        %v975 = vmax.f32 %v973, %v791
        %v976 = vmax.f32 %v974, %v797
        %v977 = vmax.f32 %v975, %v803
        %v978 = vmax.f32 %v976, %v809
        %v979 = vmax.f32 %v977, %v815
        %v980 = vmax.f32 %v978, %v821
        %v981 = vmax.f32 %v979, %v827
        %v982 = vmax.f32 %v980, %v833
        %v983 = vmax.f32 %v981, %v839
        %v984 = vmax.f32 %v982, %v845
        %v985 = vmax.f32 %v983, %v851
        %v986 = vmax.f32 %v984, %v857
        %v987 = vmax.f32 %v985, %v863
        %v988 = vmax.f32 %v986, %v869
        %v989 = vmax.f32 %v987, %v875
        %v990 = vmax.f32 %v988, %v881
        %v991 = vmax.f32 %v989, %v887
        %v992 = vmax.f32 %v990, %v893
        %v993 = vmax.f32 %v991, %v899
        %v994 = vmax.f32 %v992, %v905
        %v995 = vmax.f32 %v993, %v911
        %v996 = vmax.f32 %v994, %v917
        %v997 = vmax.f32 %v995, %v923
        %v998 = vmax.f32 %v996, %v929
        %v999 = vmax.f32 %v997, %v998
        %v1000 = vrot.slane %v999, 4
        %v1001 = vmax.f32 %v999, %v1000
        %v1002 = vrot.slane %v1001, 2
        %v1003 = vmax.f32 %v1001, %v1002
        %v1004 = vrot.slane %v1003, 1
        %v1005 = vmax.f32 %v1003, %v1004
        %v1008 = vcombine.low %v968, %v1005
        %v1010 = vunpack.c.l.s4 1966171168
        %v1011 = vunpack.c.0.s8 %v1010
        %v1012 = vlaneseq
        %v1013 = vshrl.u32 %v1012, 7
        %v1014 = vsub.s32 %v1011, %v1013
        %v1015 = vrot.slane %v1008, %v1014
        %v1017 = vunpack.c.l.s4 1966171168
        %v1018 = vunpack.c.0.s8 %v1017
        %v1019 = vlaneseq
        %v1020 = vshrl.u32 %v1019, 7
        %v1021 = vsub.s32 %v1018, %v1020
        %v1022 = vrot.slane %v1015, %v1021
        %v1024 = vmax.f32 %v931, %v1022
        %v1025 = vsub.f32 %v931, %v1024
        %v1026 = vmul.f32 %v1025, 1.442695
        %v1027 = vpow.pop %v1026
        %v1029 = vlaneseq
        %v1030 = vshrl.u32 %v1029, 7
        %v1031 = vsub.s32 0, %v1030
        %v1032 = vrot.slane %v1024, %v1031
        %v1033 = vlaneseq
        %v1034 = vshrl.u32 %v1033, 7
        %v1035 = vsub.s32 1, %v1034
        %v1036 = vrot.slane %v1024, %v1035
        %v1039 = vsub.f32 %v741, %v1032
        %v1040 = vsub.f32 %v743, %v1036
        %v1041 = vsub.f32 %v747, %v1032
        %v1042 = vsub.f32 %v749, %v1036
        %v1043 = vsub.f32 %v753, %v1032
        %v1044 = vsub.f32 %v755, %v1036
        %v1045 = vsub.f32 %v759, %v1032
        %v1046 = vsub.f32 %v761, %v1036
        %v1047 = vsub.f32 %v765, %v1032
        %v1048 = vsub.f32 %v767, %v1036
        %v1049 = vsub.f32 %v771, %v1032
        %v1050 = vsub.f32 %v773, %v1036
        %v1051 = vsub.f32 %v777, %v1032
        %v1052 = vsub.f32 %v779, %v1036
        %v1053 = vsub.f32 %v783, %v1032
        %v1054 = vsub.f32 %v785, %v1036
        %v1055 = vsub.f32 %v789, %v1032
        %v1056 = vsub.f32 %v791, %v1036
        %v1057 = vsub.f32 %v795, %v1032
        %v1058 = vsub.f32 %v797, %v1036
        %v1059 = vsub.f32 %v801, %v1032
        %v1060 = vsub.f32 %v803, %v1036
        %v1061 = vsub.f32 %v807, %v1032
        %v1062 = vsub.f32 %v809, %v1036
        %v1063 = vsub.f32 %v813, %v1032
        %v1064 = vsub.f32 %v815, %v1036
        %v1065 = vsub.f32 %v819, %v1032
        %v1066 = vsub.f32 %v821, %v1036
        %v1067 = vsub.f32 %v825, %v1032
        %v1068 = vsub.f32 %v827, %v1036
        %v1069 = vsub.f32 %v831, %v1032
        %v1070 = vsub.f32 %v833, %v1036
        %v1071 = vsub.f32 %v837, %v1032
        %v1072 = vsub.f32 %v839, %v1036
        %v1073 = vsub.f32 %v843, %v1032
        %v1074 = vsub.f32 %v845, %v1036
        %v1075 = vsub.f32 %v849, %v1032
        %v1076 = vsub.f32 %v851, %v1036
        %v1077 = vsub.f32 %v855, %v1032
        %v1078 = vsub.f32 %v857, %v1036
        %v1079 = vsub.f32 %v861, %v1032
        %v1080 = vsub.f32 %v863, %v1036
        %v1081 = vsub.f32 %v867, %v1032
        %v1082 = vsub.f32 %v869, %v1036
        %v1083 = vsub.f32 %v873, %v1032
        %v1084 = vsub.f32 %v875, %v1036
        %v1085 = vsub.f32 %v879, %v1032
        %v1086 = vsub.f32 %v881, %v1036
        %v1087 = vsub.f32 %v885, %v1032
        %v1088 = vsub.f32 %v887, %v1036
        %v1089 = vsub.f32 %v891, %v1032
        %v1090 = vsub.f32 %v893, %v1036
        %v1091 = vsub.f32 %v897, %v1032
        %v1092 = vsub.f32 %v899, %v1036
        %v1093 = vsub.f32 %v903, %v1032
        %v1094 = vsub.f32 %v905, %v1036
        %v1095 = vsub.f32 %v909, %v1032
        %v1096 = vsub.f32 %v911, %v1036
        %v1097 = vsub.f32 %v915, %v1032
        %v1098 = vsub.f32 %v917, %v1036
        %v1099 = vsub.f32 %v921, %v1032
        %v1100 = vsub.f32 %v923, %v1036
        %v1101 = vsub.f32 %v927, %v1032
        %v1102 = vsub.f32 %v929, %v1036
        %v1103 = vmul.f32 %v1039, 1.442695
        %v1104 = vpow.pop %v1103
        %v1105 = vmul.f32 %v1040, 1.442695
        %v1106 = vpow.pop %v1105
        %v1107 = vmul.f32 %v1041, 1.442695
        %v1108 = vpow.pop %v1107
        %v1109 = vmul.f32 %v1042, 1.442695
        %v1110 = vpow.pop %v1109
        %v1111 = vmul.f32 %v1043, 1.442695
        %v1112 = vpow.pop %v1111
        %v1113 = vmul.f32 %v1044, 1.442695
        %v1114 = vpow.pop %v1113
        %v1115 = vmul.f32 %v1045, 1.442695
        %v1116 = vpow.pop %v1115
        %v1117 = vmul.f32 %v1046, 1.442695
        %v1118 = vpow.pop %v1117
        %v1119 = vmul.f32 %v1047, 1.442695
        %v1120 = vpow.pop %v1119
        %v1121 = vmul.f32 %v1048, 1.442695
        %v1122 = vpow.pop %v1121
        %v1123 = vmul.f32 %v1049, 1.442695
        %v1124 = vpow.pop %v1123
        %v1125 = vmul.f32 %v1050, 1.442695
        %v1126 = vpow.pop %v1125
        %v1127 = vmul.f32 %v1051, 1.442695
        %v1128 = vpow.pop %v1127
        %v1129 = vmul.f32 %v1052, 1.442695
        %v1130 = vpow.pop %v1129
        %v1131 = vmul.f32 %v1053, 1.442695
        %v1132 = vpow.pop %v1131
        %v1133 = vmul.f32 %v1054, 1.442695
        %v1134 = vpow.pop %v1133
        %v1135 = vmul.f32 %v1055, 1.442695
        %v1136 = vpow.pop %v1135
        %v1137 = vmul.f32 %v1056, 1.442695
        %v1138 = vpow.pop %v1137
        %v1139 = vmul.f32 %v1057, 1.442695
        %v1140 = vpow.pop %v1139
        %v1141 = vmul.f32 %v1058, 1.442695
        %v1142 = vpow.pop %v1141
        %v1143 = vmul.f32 %v1059, 1.442695
        %v1144 = vpow.pop %v1143
        %v1145 = vmul.f32 %v1060, 1.442695
        %v1146 = vpow.pop %v1145
        %v1147 = vmul.f32 %v1061, 1.442695
        %v1148 = vpow.pop %v1147
        %v1149 = vmul.f32 %v1062, 1.442695
        %v1150 = vpow.pop %v1149
        %v1151 = vmul.f32 %v1063, 1.442695
        %v1152 = vpow.pop %v1151
        %v1153 = vmul.f32 %v1064, 1.442695
        %v1154 = vpow.pop %v1153
        %v1155 = vmul.f32 %v1065, 1.442695
        %v1156 = vpow.pop %v1155
        %v1157 = vmul.f32 %v1066, 1.442695
        %v1158 = vpow.pop %v1157
        %v1159 = vmul.f32 %v1067, 1.442695
        %v1160 = vpow.pop %v1159
        %v1161 = vmul.f32 %v1068, 1.442695
        %v1162 = vpow.pop %v1161
        %v1163 = vmul.f32 %v1069, 1.442695
        %v1164 = vpow.pop %v1163
        %v1165 = vmul.f32 %v1070, 1.442695
        %v1166 = vpow.pop %v1165
        %v1167 = vmul.f32 %v1071, 1.442695
        %v1168 = vpow.pop %v1167
        %v1169 = vmul.f32 %v1072, 1.442695
        %v1170 = vpow.pop %v1169
        %v1171 = vmul.f32 %v1073, 1.442695
        %v1172 = vpow.pop %v1171
        %v1173 = vmul.f32 %v1074, 1.442695
        %v1174 = vpow.pop %v1173
        %v1175 = vmul.f32 %v1075, 1.442695
        %v1176 = vpow.pop %v1175
        %v1177 = vmul.f32 %v1076, 1.442695
        %v1178 = vpow.pop %v1177
        %v1179 = vmul.f32 %v1077, 1.442695
        %v1180 = vpow.pop %v1179
        %v1181 = vmul.f32 %v1078, 1.442695
        %v1182 = vpow.pop %v1181
        %v1183 = vmul.f32 %v1079, 1.442695
        %v1184 = vpow.pop %v1183
        %v1185 = vmul.f32 %v1080, 1.442695
        %v1186 = vpow.pop %v1185
        %v1187 = vmul.f32 %v1081, 1.442695
        %v1188 = vpow.pop %v1187
        %v1189 = vmul.f32 %v1082, 1.442695
        %v1190 = vpow.pop %v1189
        %v1191 = vmul.f32 %v1083, 1.442695
        %v1192 = vpow.pop %v1191
        %v1193 = vmul.f32 %v1084, 1.442695
        %v1194 = vpow.pop %v1193
        %v1195 = vmul.f32 %v1085, 1.442695
        %v1196 = vpow.pop %v1195
        %v1197 = vmul.f32 %v1086, 1.442695
        %v1198 = vpow.pop %v1197
        %v1199 = vmul.f32 %v1087, 1.442695
        %v1200 = vpow.pop %v1199
        %v1201 = vmul.f32 %v1088, 1.442695
        %v1202 = vpow.pop %v1201
        %v1203 = vmul.f32 %v1089, 1.442695
        %v1204 = vpow.pop %v1203
        %v1205 = vmul.f32 %v1090, 1.442695
        %v1206 = vpow.pop %v1205
        %v1207 = vmul.f32 %v1091, 1.442695
        %v1208 = vpow.pop %v1207
        %v1209 = vmul.f32 %v1092, 1.442695
        %v1210 = vpow.pop %v1209
        %v1211 = vmul.f32 %v1093, 1.442695
        %v1212 = vpow.pop %v1211
        %v1213 = vmul.f32 %v1094, 1.442695
        %v1214 = vpow.pop %v1213
        %v1215 = vmul.f32 %v1095, 1.442695
        %v1216 = vpow.pop %v1215
        %v1217 = vmul.f32 %v1096, 1.442695
        %v1218 = vpow.pop %v1217
        %v1219 = vmul.f32 %v1097, 1.442695
        %v1220 = vpow.pop %v1219
        %v1221 = vmul.f32 %v1098, 1.442695
        %v1222 = vpow.pop %v1221
        %v1223 = vmul.f32 %v1099, 1.442695
        %v1224 = vpow.pop %v1223
        %v1225 = vmul.f32 %v1100, 1.442695
        %v1226 = vpow.pop %v1225
        %v1227 = vmul.f32 %v1101, 1.442695
        %v1228 = vpow.pop %v1227
        %v1229 = vmul.f32 %v1102, 1.442695
        %v1230 = vpow.pop %v1229
        %v1231 = vld [vmem:[#allocation3] sm:$0x3]
        %v1232 = vmul.f32 %v1027, %v1231
        %v1233 = vadd.f32 %v1104, %v1108
        %v1234 = vadd.f32 %v1233, %v1112
        %v1235 = vadd.f32 %v1234, %v1116
        %v1236 = vadd.f32 %v1235, %v1120
        %v1237 = vadd.f32 %v1236, %v1124
        %v1238 = vadd.f32 %v1237, %v1128
        %v1239 = vadd.f32 %v1238, %v1132
        %v1240 = vadd.f32 %v1239, %v1136
        %v1241 = vadd.f32 %v1240, %v1140
        %v1242 = vadd.f32 %v1241, %v1144
        %v1243 = vadd.f32 %v1242, %v1148
        %v1244 = vadd.f32 %v1243, %v1152
        %v1245 = vadd.f32 %v1244, %v1156
        %v1246 = vadd.f32 %v1245, %v1160
        %v1247 = vadd.f32 %v1246, %v1164
        %v1248 = vadd.f32 %v1247, %v1168
        %v1249 = vadd.f32 %v1248, %v1172
        %v1250 = vadd.f32 %v1249, %v1176
        %v1251 = vadd.f32 %v1250, %v1180
        %v1252 = vadd.f32 %v1251, %v1184
        %v1253 = vadd.f32 %v1252, %v1188
        %v1254 = vadd.f32 %v1253, %v1192
        %v1255 = vadd.f32 %v1254, %v1196
        %v1256 = vadd.f32 %v1255, %v1200
        %v1257 = vadd.f32 %v1256, %v1204
        %v1258 = vadd.f32 %v1257, %v1208
        %v1259 = vadd.f32 %v1258, %v1212
        %v1260 = vadd.f32 %v1259, %v1216
        %v1261 = vadd.f32 %v1260, %v1220
        %v1262 = vadd.f32 %v1261, %v1224
        %v1263 = vadd.f32 %v1262, %v1228
        %v1264 = vrot.slane %v1263, 4
        %v1265 = vadd.f32 %v1263, %v1264
        %v1266 = vrot.slane %v1265, 2
        %v1267 = vadd.f32 %v1265, %v1266
        %v1268 = vrot.slane %v1267, 1
        %v1269 = vadd.f32 %v1267, %v1268
        %v1270 = vadd.f32 %v1106, %v1110
        %v1271 = vadd.f32 %v1270, %v1114
        %v1272 = vadd.f32 %v1271, %v1118
        %v1273 = vadd.f32 %v1272, %v1122
        %v1274 = vadd.f32 %v1273, %v1126
        %v1275 = vadd.f32 %v1274, %v1130
        %v1276 = vadd.f32 %v1275, %v1134
        %v1277 = vadd.f32 %v1276, %v1138
        %v1278 = vadd.f32 %v1277, %v1142
        %v1279 = vadd.f32 %v1278, %v1146
        %v1280 = vadd.f32 %v1279, %v1150
        %v1281 = vadd.f32 %v1280, %v1154
        %v1282 = vadd.f32 %v1281, %v1158
        %v1283 = vadd.f32 %v1282, %v1162
        %v1284 = vadd.f32 %v1283, %v1166
        %v1285 = vadd.f32 %v1284, %v1170
        %v1286 = vadd.f32 %v1285, %v1174
        %v1287 = vadd.f32 %v1286, %v1178
        %v1288 = vadd.f32 %v1287, %v1182
        %v1289 = vadd.f32 %v1288, %v1186
        %v1290 = vadd.f32 %v1289, %v1190
        %v1291 = vadd.f32 %v1290, %v1194
        %v1292 = vadd.f32 %v1291, %v1198
        %v1293 = vadd.f32 %v1292, %v1202
        %v1294 = vadd.f32 %v1293, %v1206
        %v1295 = vadd.f32 %v1294, %v1210
        %v1296 = vadd.f32 %v1295, %v1214
        %v1297 = vadd.f32 %v1296, %v1218
        %v1298 = vadd.f32 %v1297, %v1222
        %v1299 = vadd.f32 %v1298, %v1226
        %v1300 = vadd.f32 %v1299, %v1230
        %v1301 = vrot.slane %v1300, 4
        %v1302 = vadd.f32 %v1300, %v1301
        %v1303 = vrot.slane %v1302, 2
        %v1304 = vadd.f32 %v1302, %v1303
        %v1305 = vrot.slane %v1304, 1
        %v1306 = vadd.f32 %v1304, %v1305
        %v1309 = vcombine.low %v1269, %v1306
        %v1311 = vunpack.c.l.s4 1966171168
        %v1312 = vunpack.c.0.s8 %v1311
        %v1313 = vlaneseq
        %v1314 = vshrl.u32 %v1313, 7
        %v1315 = vsub.s32 %v1312, %v1314
        %v1316 = vrot.slane %v1309, %v1315
        %v1318 = vunpack.c.l.s4 1966171168
        %v1319 = vunpack.c.0.s8 %v1318
        %v1320 = vlaneseq
        %v1321 = vshrl.u32 %v1320, 7
        %v1322 = vsub.s32 %v1319, %v1321
        %v1323 = vrot.slane %v1316, %v1322
        %v1325 = vadd.f32 %v1232, %v1323
        %v1326 = vlaneseq
        %vm1327 = vcmp.ge.s32.totalorder %v1326, 0
        %vm1328 = vcmp.lt.s32.totalorder %v1326, 256
        %vm1329 = vmand %vm1327, %vm1328
        %1330 = vst.msk [vmem:[#allocation3] sm:$0x3] %vm1329, %v1325
        %v1331 = vld [vmem:[%s308] sm:$0xff]
        %v1332 = vld [vmem:[%s308 + $0x8] sm:$0xff]
        %v1333 = vld [vmem:[%s308 + $0x10] sm:$0xff]
        %v1334 = vld [vmem:[%s308 + $0x18] sm:$0xff]
        %1335 = vmatprep.subr.mxu0 %v1106
        %1336 = vmatpush1.msra.mxu0 %v1104
        %1337 = vmatprep.subr.mxu0 %v1110
        %1338 = vmatpush1.msra.mxu0 %v1108
        %1339 = vmatprep.subr.mxu0 %v1114
        %1340 = vmatpush1.msra.mxu0 %v1112
        %1341 = vmatprep.subr.mxu0 %v1118
        %1342 = vmatpush1.msra.mxu0 %v1116
        %1343 = vmatprep.subr.mxu0 %v1122
        %1344 = vmatpush1.msra.mxu0 %v1120
        %1345 = vmatprep.subr.mxu0 %v1126
        %1346 = vmatpush1.msra.mxu0 %v1124
        %1347 = vmatprep.subr.mxu0 %v1130
        %1348 = vmatpush1.msra.mxu0 %v1128
        %1349 = vmatprep.subr.mxu0 %v1134
        %1350 = vmatpush1.msra.mxu0 %v1132
        %1351 = vmatprep.subr.mxu0 %v1138
        %1352 = vmatpush1.msra.mxu0 %v1136
        %1353 = vmatprep.subr.mxu0 %v1142
        %1354 = vmatpush1.msra.mxu0 %v1140
        %1355 = vmatprep.subr.mxu0 %v1146
        %1356 = vmatpush1.msra.mxu0 %v1144
        %1357 = vmatprep.subr.mxu0 %v1150
        %1358 = vmatpush1.msra.mxu0 %v1148
        %1359 = vmatprep.subr.mxu0 %v1154
        %1360 = vmatpush1.msra.mxu0 %v1152
        %1361 = vmatprep.subr.mxu0 %v1158
        %1362 = vmatpush1.msra.mxu0 %v1156
        %1363 = vmatprep.subr.mxu0 %v1162
        %1364 = vmatpush1.msra.mxu0 %v1160
        %1365 = vmatprep.subr.mxu0 %v1166
        %1366 = vmatpush1.msra.mxu0 %v1164
        %1367 = vmatprep.subr.mxu0 %v1170
        %1368 = vmatpush1.msra.mxu0 %v1168
        %1369 = vmatprep.subr.mxu0 %v1174
        %1370 = vmatpush1.msra.mxu0 %v1172
        %1371 = vmatprep.subr.mxu0 %v1178
        %1372 = vmatpush1.msra.mxu0 %v1176
        %1373 = vmatprep.subr.mxu0 %v1182
        %1374 = vmatpush1.msra.mxu0 %v1180
        %1375 = vmatprep.subr.mxu0 %v1186
        %1376 = vmatpush1.msra.mxu0 %v1184
        %1377 = vmatprep.subr.mxu0 %v1190
        %1378 = vmatpush1.msra.mxu0 %v1188
        %1379 = vmatprep.subr.mxu0 %v1194
        %1380 = vmatpush1.msra.mxu0 %v1192
        %1381 = vmatprep.subr.mxu0 %v1198
        %1382 = vmatpush1.msra.mxu0 %v1196
        %1383 = vmatprep.subr.mxu0 %v1202
        %1384 = vmatpush1.msra.mxu0 %v1200
        %1385 = vmatprep.subr.mxu0 %v1206
        %1386 = vmatpush1.msra.mxu0 %v1204
        %1387 = vmatprep.subr.mxu0 %v1210
        %1388 = vmatpush1.msra.mxu0 %v1208
        %1389 = vmatprep.subr.mxu0 %v1214
        %1390 = vmatpush1.msra.mxu0 %v1212
        %1391 = vmatprep.subr.mxu0 %v1218
        %1392 = vmatpush1.msra.mxu0 %v1216
        %1393 = vmatprep.subr.mxu0 %v1222
        %1394 = vmatpush1.msra.mxu0 %v1220
        %1395 = vmatprep.subr.mxu0 %v1226
        %1396 = vmatpush1.msra.mxu0 %v1224
        %1397 = vmatprep.subr.mxu0 %v1230
        %1398 = vmatpush1.msra.mxu0 %v1228
        %1399 = vmatprep.mubr.f32.mxu0 %v1332
        %1400 = vmatmul.mubr.f32.gmra.mrb[0].mxu0 %v1331
        %v1401 = vpop.f32.mrb[0].mxu0
        %v1402 = vadd.f32 0.0, %v1401
        %v1403 = vpop.f32.mrb[0].mxu0
        %v1404 = vadd.f32 0.0, %v1403
        %1405 = vmatprep.mubr.f32.mxu0 %v1334
        %1406 = vmatmul.mubr.f32.gmra.mrb[0].mxu0 %v1333
        %v1407 = vpop.f32.mrb[0].mxu0
        %v1408 = vadd.f32 0.0, %v1407
        %v1409 = vpop.f32.mrb[0].mxu0
        %v1410 = vadd.f32 0.0, %v1409
        %1411 = vdwg.mxu0
        %v1412 = vld [vmem:[#allocation4] sm:$0xff]
        %v1413 = vld [vmem:[#allocation4 + $0x8] sm:$0xff]
        %v1414 = vld [vmem:[#allocation4 + $0x10] sm:$0xff]
        %v1415 = vld [vmem:[#allocation4 + $0x18] sm:$0xff]
        %v1417 = vlaneseq
        %v1418 = vshrl.u32 %v1417, 7
        %v1419 = vsub.s32 0, %v1418
        %v1420 = vrot.slane %v1027, %v1419
        %v1421 = vlaneseq
        %v1422 = vshrl.u32 %v1421, 7
        %v1423 = vsub.s32 1, %v1422
        %v1424 = vrot.slane %v1027, %v1423
        %v1427 = vmul.f32 %v1420, %v1412
        %v1428 = vmul.f32 %v1424, %v1413
        %v1429 = vmul.f32 %v1420, %v1414
        %v1430 = vmul.f32 %v1424, %v1415
        %v1431 = vadd.f32 %v1427, %v1402
        %v1432 = vadd.f32 %v1428, %v1404
        %v1433 = vadd.f32 %v1429, %v1408
        %v1434 = vadd.f32 %v1430, %v1410
        %1435 = vst [vmem:[#allocation4] sm:$0xff] %v1431
        %1436 = vst [vmem:[#allocation4 + $0x8] sm:$0xff] %v1432
        %1437 = vst [vmem:[#allocation4 + $0x10] sm:$0xff] %v1433
        %1438 = vst [vmem:[#allocation4 + $0x18] sm:$0xff] %v1434
        %1439 = vst.msk [vmem:[#allocation2] sm:$0x3] %vm1329, %v1024
        // Predicated region
        $region57: #{tpu_custom_call.1} parent=35 // pred_check
          %p1440 = pneg %p347
        $region58: #{tpu_custom_call.1} parent=35 // pred_check_branch
          %1442 = sbr.rel (%p1440) target = $region60
        $region59: #{tpu_custom_call.1} parent=35 // pred_region
          %v1443 = vld [vmem:[%s286] sm:$0xff]
          %v1444 = vld [vmem:[%s286 + $0x8] sm:$0xff]
          %v1445 = vld [vmem:[%s286 + $0x10] sm:$0xff]
          %v1446 = vld [vmem:[%s286 + $0x18] sm:$0xff]
          %v1447 = vld [vmem:[#allocation4] sm:$0xff]
          %v1448 = vld [vmem:[#allocation4 + $0x8] sm:$0xff]
          %v1449 = vld [vmem:[#allocation4 + $0x10] sm:$0xff]
          %v1450 = vld [vmem:[#allocation4 + $0x18] sm:$0xff]
          %v1451 = vld [vmem:[#allocation3] sm:$0x3]
          %v1453 = vlaneseq
          %v1454 = vshrl.u32 %v1453, 7
          %v1455 = vsub.s32 0, %v1454
          %v1456 = vrot.slane %v1451, %v1455
          %v1457 = vlaneseq
          %v1458 = vshrl.u32 %v1457, 7
          %v1459 = vsub.s32 1, %v1458
          %v1460 = vrot.slane %v1451, %v1459
          %v1463 = vrcp.pop %v1456
          %v1464 = vmul.f32 %v1447, %v1463
          %v1465 = vrcp.pop %v1460
          %v1466 = vmul.f32 %v1448, %v1465
          %v1467 = vmul.f32 %v1449, %v1463
          %v1468 = vmul.f32 %v1450, %v1465
          %v1469 = vadd.f32 %v1464, %v1443
          %v1470 = vadd.f32 %v1466, %v1444
          %v1471 = vadd.f32 %v1467, %v1445
          %v1472 = vadd.f32 %v1468, %v1446
          %1473 = vst [vmem:[%s342] sm:$0xff] %v1469
          %1474 = vst [vmem:[%s342 + $0x8] sm:$0xff] %v1470
          %1475 = vst [vmem:[%s342 + $0x10] sm:$0xff] %v1471
          %1476 = vst [vmem:[%s342 + $0x18] sm:$0xff] %v1472
        $region60: #{tpu_custom_call.1} parent=35 // pred_fallthru
          _
        %s1477 = sand.u32 %s161, 1
        %s1478 = scalar_lea.sflag [#allocation8], %s1477
        %s1479 = sand.u32 %s161, 1
        %s1480 = smul.addr %s1479, 32
        %s1481 = scalar_lea.vmem [#allocation14], %s1480
        // Predicated region
        $region61: #{tpu_custom_call.1} parent=35 // pred_check
          %p1482 = pneg %p171
        $region62: #{tpu_custom_call.1} parent=35 // pred_check_branch
          %1484 = sbr.rel (%p1482) target = $region64
        $region63: #{tpu_custom_call.1} parent=35 // pred_region
          %s1485 = smul.u32 2, %s33
          %s1487 = ssub.s32 512, 512
          %1488 = vsyncadd %s1478, %s1487
          %s1489 = smul.addr %s32, 4
          %s1490 = sadd.s32 %s1485, %s1489
          %s1491 = smul.addr %s1490, 128
          %s1492 = scalar_lea.hbm %s4, %s1491
          %s1493 = sshll.u32 %s1481, 4
          %s1494 = int_to_ptr.vmem [resolvable:$true] %s1493
          %1499 = dma.vmem_to_hbm [thread:$0]  %s1494, 512, %s1492, %s1478, 256, 256, 16
        $region64: #{tpu_custom_call.1} parent=35 // pred_fallthru
          _
      $region36: #{tpu_custom_call.1} parent=5 // pred_fallthru
        _
      %p1500 = scmp.le.s32.totalorder 2, %s22
      // Predicated region
      $region65: #{tpu_custom_call.1} parent=5 // pred_check
        %p1501 = pneg %p1500
      $region66: #{tpu_custom_call.1} parent=5 // pred_check_branch
        %1503 = sbr.rel (%p1501) target = $region68
      $region67: #{tpu_custom_call.1} parent=5 // pred_region
        %s1504 = ssub.s32 %s22, 2
        // Predicated region
        $region69: #{tpu_custom_call.1} parent=67 // pred_check
          %p1505 = pneg %p177
        $region70: #{tpu_custom_call.1} parent=67 // pred_check_branch
          %1507 = sbr.rel (%p1505) target = $region72
        $region71: #{tpu_custom_call.1} parent=67 // pred_region
          %s1508 = sand.u32 %s162, 1
          %s1509 = scalar_lea.sflag [#allocation8], %s1508
          %s1510 = sand.u32 %s162, 1
          %s1511 = smul.addr %s1510, 32
          %s1512 = scalar_lea.vmem [#allocation14], %s1511
          %1513 = dma.done %s1509, 512
        $region72: #{tpu_custom_call.1} parent=67 // pred_fallthru
          _
      $region68: #{tpu_custom_call.1} parent=5 // pred_fallthru
        _
    $region6: #{tpu_custom_call.1} parent=1 // loop_footer
      %s26 = sadd.s32 1, %s22
    $region7: #{tpu_custom_call.1} parent=1 // loop_footer_branch
      %21 = sbr.rel target = $region3
    $region8: #{tpu_custom_call.1} parent=1 // loop_exit
      _
    %1514 = vsyncpa [#allocation7], 1
    %s1515 = scalar_lea.sflag [#allocation7], 1
    %1516 = vsyncpa %s1515, 1
    %1517 = vsyncpa [#allocation10], 1
    %s1518 = scalar_lea.sflag [#allocation10], 1
    %1519 = vsyncpa %s1518, 1
    %1520 = vsyncpa [#allocation13], 1
    %s1521 = scalar_lea.sflag [#allocation13], 1
    %1522 = vsyncpa %s1521, 1
    %1523 = vsyncpa [#allocation8], 1
    %s1524 = scalar_lea.sflag [#allocation8], 1
    %1525 = vsyncpa %s1524, 1

</llo_original>
